<compile_context>
chip_gen: v5e
topology: v5e:2x2
jax: 0.10.0
libtpu: 0.0.40
codegen_flags: <defaults>
</compile_context>

<pallas_src>
import jax
import jax.numpy as jnp
from jax import lax
from jax.experimental import pallas as pl
from jax.experimental.pallas import tpu as pltpu

EPS = 1e-5


def _gn_relu(x, gamma, beta):
    """GroupNorm(num_groups=1) over the whole (points, channels) tile of one
    sample, per-channel affine along the lane axis, then ReLU."""
    mean = jnp.mean(x, keepdims=True)                      # (1, 1)
    var = jnp.mean(jnp.square(x - mean), keepdims=True)    # biased, like torch
    xn = (x - mean) * lax.rsqrt(var + EPS)
    return jnp.maximum(xn * gamma + beta, 0.0)


def pc_encoder_kernel(
    pc_ref,
    w1_ref, b1_ref, w2_ref, b2_ref, w3_ref, b3_ref,
    w4_ref, b4_ref, w5_ref, b5_ref,
    g1_ref, be1_ref, g2_ref, be2_ref, g3_ref, be3_ref,
    out_ref,
):
    x = pc_ref[0]                        # (P, Cin), channels on lanes
    cin = x.shape[1]

    # conv1: K = num_channels is tiny (3) -> VPU broadcast FMAs instead of a
    # degenerate K=3 MXU matmul.
    w1 = w1_ref[...]                     # (Cin, 64)
    h = x[:, 0:1] * w1[0:1, :]
    for c in range(1, cin):              # static, small loop
        h = h + x[:, c:c + 1] * w1[c:c + 1, :]
    x = _gn_relu(h + b1_ref[...], g1_ref[...], be1_ref[...])

    # conv2 / conv3 reuse bn1 (same affine), exactly as in the PyTorch module.
    x = _gn_relu(
        jnp.dot(x, w2_ref[...], preferred_element_type=jnp.float32) + b2_ref[...],
        g1_ref[...], be1_ref[...])
    x = _gn_relu(
        jnp.dot(x, w3_ref[...], preferred_element_type=jnp.float32) + b3_ref[...],
        g1_ref[...], be1_ref[...])
    x = _gn_relu(
        jnp.dot(x, w4_ref[...], preferred_element_type=jnp.float32) + b4_ref[...],
        g2_ref[...], be2_ref[...])
    x = _gn_relu(
        jnp.dot(x, w5_ref[...], preferred_element_type=jnp.float32) + b5_ref[...],
        g3_ref[...], be3_ref[...])

    # Global max-pool over points -> lane-dense (1, embedding_size) row.
    out_ref[0] = jnp.max(x, axis=0, keepdims=True)


def init_params(key, num_channels=3, embedding_size=256):
    """Deterministic synthetic parameters. Conv weights stored as (in, out)."""
    conv_dims = {
        "conv1": (num_channels, 64),
        "conv2": (64, 64),
        "conv3": (64, 64),
        "conv4": (64, 128),
        "conv5": (128, embedding_size),
    }
    params = {}
    keys = jax.random.split(key, len(conv_dims))
    for (name, (din, dout)), k in zip(conv_dims.items(), keys):
        kw, kb = jax.random.split(k)
        scale = 1.0 / jnp.sqrt(jnp.float32(din))
        params[name + "_w"] = (jax.random.uniform(kw, (din, dout), jnp.float32,
                                                  -1.0, 1.0) * scale)
        params[name + "_b"] = (jax.random.uniform(kb, (1, dout), jnp.float32,
                                                  -1.0, 1.0) * scale)
    # GroupNorm affines: default init is gamma=1, beta=0 — nudge them so the
    # affine path is actually exercised.
    gn_dims = {"bn1": 64, "bn2": 128, "bn3": embedding_size}
    for i, (name, c) in enumerate(gn_dims.items()):
        params[name + "_g"] = (1.0 + 0.01 * jnp.arange(c, dtype=jnp.float32)
                               ).reshape(1, c)
        params[name + "_b"] = 0.01 * (i + 1) * jnp.ones((1, c), jnp.float32)
    return params


def pointcloud_encoder_forward(pc, params):
    """pc: (B, num_channels, num_points), same layout as the PyTorch module."""
    b, cin, n_pts = pc.shape
    emb = params["conv5_w"].shape[1]
    pc_t = jnp.transpose(pc, (0, 2, 1))   # (B, P, Cin): channels lane-dense

    p = params
    weight_args = (
        p["conv1_w"], p["conv1_b"], p["conv2_w"], p["conv2_b"],
        p["conv3_w"], p["conv3_b"], p["conv4_w"], p["conv4_b"],
        p["conv5_w"], p["conv5_b"],
        p["bn1_g"], p["bn1_b"], p["bn2_g"], p["bn2_b"], p["bn3_g"], p["bn3_b"],
    )
    weight_specs = [pl.BlockSpec(w.shape, lambda i: (0, 0)) for w in weight_args]

    in_specs = [pl.BlockSpec((1, n_pts, cin), lambda i: (i, 0, 0))] + weight_specs
    out_specs = pl.BlockSpec((1, 1, emb), lambda i: (i, 0, 0))

    out = pl.pallas_call(
        pc_encoder_kernel,
        out_shape=jax.ShapeDtypeStruct((b, 1, emb), jnp.float32),
        grid_spec=pltpu.PrefetchScalarGridSpec(
            num_scalar_prefetch=0,
            grid=(b,),                    # one full sample per grid step
            in_specs=in_specs,
            out_specs=out_specs,
        ),
        compiler_params=pltpu.CompilerParams(
            dimension_semantics=("parallel",)),
    )(pc_t, *weight_args)
    return out.reshape(b, emb)


def reference_forward(pc, p):
    """Plain-JAX reference matching the PyTorch forward semantics (B, C, N)."""
    def conv(x, w, bias):
        return jnp.einsum("bin,io->bon", x, w) + bias.reshape(1, -1, 1)

    def gn(x, g, bias):
        m = jnp.mean(x, axis=(1, 2), keepdims=True)
        v = jnp.mean(jnp.square(x - m), axis=(1, 2), keepdims=True)
        return ((x - m) * lax.rsqrt(v + EPS) * g.reshape(1, -1, 1)
                + bias.reshape(1, -1, 1))

    x = jax.nn.relu(gn(conv(pc, p["conv1_w"], p["conv1_b"]), p["bn1_g"], p["bn1_b"]))
    x = jax.nn.relu(gn(conv(x, p["conv2_w"], p["conv2_b"]), p["bn1_g"], p["bn1_b"]))
    x = jax.nn.relu(gn(conv(x, p["conv3_w"], p["conv3_b"]), p["bn1_g"], p["bn1_b"]))
    x = jax.nn.relu(gn(conv(x, p["conv4_w"], p["conv4_b"]), p["bn2_g"], p["bn2_b"]))
    x = jax.nn.relu(gn(conv(x, p["conv5_w"], p["conv5_b"]), p["bn3_g"], p["bn3_b"]))
    return jnp.max(x, axis=2)             # (B, embedding_size)


if __name__ == "__main__":
    key = jax.random.PRNGKey(0)
    k_params, k_pc = jax.random.split(key)

    B, C, P = 2, 3, 128                    # 2 samples, xyz channels, 128 points
    EMB = 256
    params = init_params(k_params, num_channels=C, embedding_size=EMB)
    pc = jax.random.normal(k_pc, (B, C, P), jnp.float32)

    out = pointcloud_encoder_forward(pc, params)
    out = jax.block_until_ready(out)

    ref = reference_forward(pc, params)
    assert out.shape == (B, EMB)
    assert jnp.max(jnp.abs(out - ref)) < 1e-3, "mismatch vs pure-JAX reference"

    print("KERNEL_OK")
</pallas_src>

<mosaic_0001>
module attributes {stable_mosaic.version = 11 : i64} {
  func.func @pc_encoder_kernel(%arg0: i32, %arg1: memref<1x128x3xf32, #tpu.memory_space<vmem>>, %arg2: memref<3x64xf32, #tpu.memory_space<vmem>>, %arg3: memref<1x64xf32, #tpu.memory_space<vmem>>, %arg4: memref<64x64xf32, #tpu.memory_space<vmem>>, %arg5: memref<1x64xf32, #tpu.memory_space<vmem>>, %arg6: memref<64x64xf32, #tpu.memory_space<vmem>>, %arg7: memref<1x64xf32, #tpu.memory_space<vmem>>, %arg8: memref<64x128xf32, #tpu.memory_space<vmem>>, %arg9: memref<1x128xf32, #tpu.memory_space<vmem>>, %arg10: memref<128x256xf32, #tpu.memory_space<vmem>>, %arg11: memref<1x256xf32, #tpu.memory_space<vmem>>, %arg12: memref<1x64xf32, #tpu.memory_space<vmem>>, %arg13: memref<1x64xf32, #tpu.memory_space<vmem>>, %arg14: memref<1x128xf32, #tpu.memory_space<vmem>>, %arg15: memref<1x128xf32, #tpu.memory_space<vmem>>, %arg16: memref<1x256xf32, #tpu.memory_space<vmem>>, %arg17: memref<1x256xf32, #tpu.memory_space<vmem>>, %arg18: memref<1x1x256xf32, #tpu.memory_space<vmem>>) attributes {dimension_semantics = [#tpu.dimension_semantics<parallel>], iteration_bounds = array<i64: 2>, scalar_prefetch = 0 : i64, scratch_operands = 0 : i64, tpu.core_type = #tpu.core_type<tc>, window_params = [{transform_indices = @transform_0, window_bounds = array<i64: 1, 128, 3>}, {pipeline_mode = #tpu.pipeline_mode<synchronous>, transform_indices = @transform_1, window_bounds = array<i64: 3, 64>}, {pipeline_mode = #tpu.pipeline_mode<synchronous>, transform_indices = @transform_2, window_bounds = array<i64: 1, 64>}, {pipeline_mode = #tpu.pipeline_mode<synchronous>, transform_indices = @transform_3, window_bounds = array<i64: 64, 64>}, {pipeline_mode = #tpu.pipeline_mode<synchronous>, transform_indices = @transform_4, window_bounds = array<i64: 1, 64>}, {pipeline_mode = #tpu.pipeline_mode<synchronous>, transform_indices = @transform_5, window_bounds = array<i64: 64, 64>}, {pipeline_mode = #tpu.pipeline_mode<synchronous>, transform_indices = @transform_6, window_bounds = array<i64: 1, 64>}, {pipeline_mode = #tpu.pipeline_mode<synchronous>, transform_indices = @transform_7, window_bounds = array<i64: 64, 128>}, {pipeline_mode = #tpu.pipeline_mode<synchronous>, transform_indices = @transform_8, window_bounds = array<i64: 1, 128>}, {pipeline_mode = #tpu.pipeline_mode<synchronous>, transform_indices = @transform_9, window_bounds = array<i64: 128, 256>}, {pipeline_mode = #tpu.pipeline_mode<synchronous>, transform_indices = @transform_10, window_bounds = array<i64: 1, 256>}, {pipeline_mode = #tpu.pipeline_mode<synchronous>, transform_indices = @transform_11, window_bounds = array<i64: 1, 64>}, {pipeline_mode = #tpu.pipeline_mode<synchronous>, transform_indices = @transform_12, window_bounds = array<i64: 1, 64>}, {pipeline_mode = #tpu.pipeline_mode<synchronous>, transform_indices = @transform_13, window_bounds = array<i64: 1, 128>}, {pipeline_mode = #tpu.pipeline_mode<synchronous>, transform_indices = @transform_14, window_bounds = array<i64: 1, 128>}, {pipeline_mode = #tpu.pipeline_mode<synchronous>, transform_indices = @transform_15, window_bounds = array<i64: 1, 256>}, {pipeline_mode = #tpu.pipeline_mode<synchronous>, transform_indices = @transform_16, window_bounds = array<i64: 1, 256>}, {transform_indices = @transform_17, window_bounds = array<i64: 1, 1, 256>}]} {
    %c0 = arith.constant 0 : index
    %c0_0 = arith.constant 0 : index
    %c0_1 = arith.constant 0 : index
    %0 = vector.load %arg1[%c0, %c0_0, %c0_1] : memref<1x128x3xf32, #tpu.memory_space<vmem>>, vector<1x128x3xf32>
    %1 = vector.shape_cast %0 : vector<1x128x3xf32> to vector<128x3xf32>
    %c0_2 = arith.constant 0 : index
    %c0_3 = arith.constant 0 : index
    %2 = vector.load %arg2[%c0_2, %c0_3] : memref<3x64xf32, #tpu.memory_space<vmem>>, vector<3x64xf32>
    %3 = vector.extract_strided_slice %1 {offsets = [0, 0], sizes = [128, 1], strides = [1, 1]} : vector<128x3xf32> to vector<128x1xf32>
    %4 = vector.extract_strided_slice %2 {offsets = [0, 0], sizes = [1, 64], strides = [1, 1]} : vector<3x64xf32> to vector<1x64xf32>
    %5 = vector.broadcast %3 : vector<128x1xf32> to vector<128x64xf32>
    %6 = vector.broadcast %4 : vector<1x64xf32> to vector<128x64xf32>
    %7 = arith.mulf %5, %6 : vector<128x64xf32>
    %8 = vector.extract_strided_slice %1 {offsets = [0, 1], sizes = [128, 1], strides = [1, 1]} : vector<128x3xf32> to vector<128x1xf32>
    %9 = vector.extract_strided_slice %2 {offsets = [1, 0], sizes = [1, 64], strides = [1, 1]} : vector<3x64xf32> to vector<1x64xf32>
    %10 = vector.broadcast %8 : vector<128x1xf32> to vector<128x64xf32>
    %11 = vector.broadcast %9 : vector<1x64xf32> to vector<128x64xf32>
    %12 = arith.mulf %10, %11 : vector<128x64xf32>
    %13 = arith.addf %7, %12 : vector<128x64xf32>
    %14 = vector.extract_strided_slice %1 {offsets = [0, 2], sizes = [128, 1], strides = [1, 1]} : vector<128x3xf32> to vector<128x1xf32>
    %15 = vector.extract_strided_slice %2 {offsets = [2, 0], sizes = [1, 64], strides = [1, 1]} : vector<3x64xf32> to vector<1x64xf32>
    %16 = vector.broadcast %14 : vector<128x1xf32> to vector<128x64xf32>
    %17 = vector.broadcast %15 : vector<1x64xf32> to vector<128x64xf32>
    %18 = arith.mulf %16, %17 : vector<128x64xf32>
    %19 = arith.addf %13, %18 : vector<128x64xf32>
    %c0_4 = arith.constant 0 : index
    %c0_5 = arith.constant 0 : index
    %20 = vector.load %arg3[%c0_4, %c0_5] : memref<1x64xf32, #tpu.memory_space<vmem>>, vector<1x64xf32>
    %21 = vector.broadcast %20 : vector<1x64xf32> to vector<128x64xf32>
    %22 = arith.addf %19, %21 : vector<128x64xf32>
    %c0_6 = arith.constant 0 : index
    %c0_7 = arith.constant 0 : index
    %23 = vector.load %arg12[%c0_6, %c0_7] : memref<1x64xf32, #tpu.memory_space<vmem>>, vector<1x64xf32>
    %c0_8 = arith.constant 0 : index
    %c0_9 = arith.constant 0 : index
    %24 = vector.load %arg13[%c0_8, %c0_9] : memref<1x64xf32, #tpu.memory_space<vmem>>, vector<1x64xf32>
    %25 = vector.shape_cast %22 : vector<128x64xf32> to vector<1x128x64xf32>
    %cst = arith.constant dense<0.000000e+00> : vector<1xf32>
    %26 = vector.multi_reduction <add>, %25, %cst [1, 2] : vector<1x128x64xf32> to vector<1xf32>
    %27 = vector.shape_cast %26 : vector<1xf32> to vector<1x1x1xf32>
    %28 = vector.extract %27[0, 0, 0] : f32 from vector<1x1x1xf32>
    %29 = vector.broadcast %28 : f32 to vector<1x1xf32>
    %cst_10 = arith.constant 8.192000e+03 : f32
    %30 = vector.broadcast %cst_10 : f32 to vector<1x1xf32>
    %31 = arith.divf %29, %30 : vector<1x1xf32>
    %32 = vector.broadcast %31 : vector<1x1xf32> to vector<128x64xf32>
    %33 = arith.subf %22, %32 : vector<128x64xf32>
    %34 = arith.mulf %33, %33 : vector<128x64xf32>
    %35 = vector.shape_cast %34 : vector<128x64xf32> to vector<1x128x64xf32>
    %cst_11 = arith.constant dense<0.000000e+00> : vector<1xf32>
    %36 = vector.multi_reduction <add>, %35, %cst_11 [1, 2] : vector<1x128x64xf32> to vector<1xf32>
    %37 = vector.shape_cast %36 : vector<1xf32> to vector<1x1x1xf32>
    %38 = vector.extract %37[0, 0, 0] : f32 from vector<1x1x1xf32>
    %39 = vector.broadcast %38 : f32 to vector<1x1xf32>
    %cst_12 = arith.constant 8.192000e+03 : f32
    %40 = vector.broadcast %cst_12 : f32 to vector<1x1xf32>
    %41 = arith.divf %39, %40 : vector<1x1xf32>
    %42 = vector.broadcast %31 : vector<1x1xf32> to vector<128x64xf32>
    %43 = arith.subf %22, %42 : vector<128x64xf32>
    %cst_13 = arith.constant 9.99999974E-6 : f32
    %44 = vector.broadcast %cst_13 : f32 to vector<1x1xf32>
    %45 = arith.addf %41, %44 : vector<1x1xf32>
    %46 = math.rsqrt %45 : vector<1x1xf32>
    %47 = vector.broadcast %46 : vector<1x1xf32> to vector<128x64xf32>
    %48 = arith.mulf %43, %47 : vector<128x64xf32>
    %49 = vector.broadcast %23 : vector<1x64xf32> to vector<128x64xf32>
    %50 = arith.mulf %48, %49 : vector<128x64xf32>
    %51 = vector.broadcast %24 : vector<1x64xf32> to vector<128x64xf32>
    %52 = arith.addf %50, %51 : vector<128x64xf32>
    %cst_14 = arith.constant 0.000000e+00 : f32
    %53 = vector.broadcast %cst_14 : f32 to vector<128x64xf32>
    %54 = arith.maximumf %52, %53 : vector<128x64xf32>
    %c0_15 = arith.constant 0 : index
    %c0_16 = arith.constant 0 : index
    %55 = vector.load %arg4[%c0_15, %c0_16] : memref<64x64xf32, #tpu.memory_space<vmem>>, vector<64x64xf32>
    %cst_17 = arith.constant dense<0.000000e+00> : vector<128x64xf32>
    %56 = tpu.matmul %54, %55, %cst_17 {dimension_numbers = #tpu.dot_dimension_numbers<[1], [0], [0], [1], [0, 0, 1, 1], [], []>} : vector<128x64xf32>, vector<64x64xf32>, vector<128x64xf32> -> vector<128x64xf32>
    %c0_18 = arith.constant 0 : index
    %c0_19 = arith.constant 0 : index
    %57 = vector.load %arg5[%c0_18, %c0_19] : memref<1x64xf32, #tpu.memory_space<vmem>>, vector<1x64xf32>
    %58 = vector.broadcast %57 : vector<1x64xf32> to vector<128x64xf32>
    %59 = arith.addf %56, %58 : vector<128x64xf32>
    %c0_20 = arith.constant 0 : index
    %c0_21 = arith.constant 0 : index
    %60 = vector.load %arg12[%c0_20, %c0_21] : memref<1x64xf32, #tpu.memory_space<vmem>>, vector<1x64xf32>
    %c0_22 = arith.constant 0 : index
    %c0_23 = arith.constant 0 : index
    %61 = vector.load %arg13[%c0_22, %c0_23] : memref<1x64xf32, #tpu.memory_space<vmem>>, vector<1x64xf32>
    %62 = vector.shape_cast %59 : vector<128x64xf32> to vector<1x128x64xf32>
    %cst_24 = arith.constant dense<0.000000e+00> : vector<1xf32>
    %63 = vector.multi_reduction <add>, %62, %cst_24 [1, 2] : vector<1x128x64xf32> to vector<1xf32>
    %64 = vector.shape_cast %63 : vector<1xf32> to vector<1x1x1xf32>
    %65 = vector.extract %64[0, 0, 0] : f32 from vector<1x1x1xf32>
    %66 = vector.broadcast %65 : f32 to vector<1x1xf32>
    %cst_25 = arith.constant 8.192000e+03 : f32
    %67 = vector.broadcast %cst_25 : f32 to vector<1x1xf32>
    %68 = arith.divf %66, %67 : vector<1x1xf32>
    %69 = vector.broadcast %68 : vector<1x1xf32> to vector<128x64xf32>
    %70 = arith.subf %59, %69 : vector<128x64xf32>
    %71 = arith.mulf %70, %70 : vector<128x64xf32>
    %72 = vector.shape_cast %71 : vector<128x64xf32> to vector<1x128x64xf32>
    %cst_26 = arith.constant dense<0.000000e+00> : vector<1xf32>
    %73 = vector.multi_reduction <add>, %72, %cst_26 [1, 2] : vector<1x128x64xf32> to vector<1xf32>
    %74 = vector.shape_cast %73 : vector<1xf32> to vector<1x1x1xf32>
    %75 = vector.extract %74[0, 0, 0] : f32 from vector<1x1x1xf32>
    %76 = vector.broadcast %75 : f32 to vector<1x1xf32>
    %cst_27 = arith.constant 8.192000e+03 : f32
    %77 = vector.broadcast %cst_27 : f32 to vector<1x1xf32>
    %78 = arith.divf %76, %77 : vector<1x1xf32>
    %79 = vector.broadcast %68 : vector<1x1xf32> to vector<128x64xf32>
    %80 = arith.subf %59, %79 : vector<128x64xf32>
    %cst_28 = arith.constant 9.99999974E-6 : f32
    %81 = vector.broadcast %cst_28 : f32 to vector<1x1xf32>
    %82 = arith.addf %78, %81 : vector<1x1xf32>
    %83 = math.rsqrt %82 : vector<1x1xf32>
    %84 = vector.broadcast %83 : vector<1x1xf32> to vector<128x64xf32>
    %85 = arith.mulf %80, %84 : vector<128x64xf32>
    %86 = vector.broadcast %60 : vector<1x64xf32> to vector<128x64xf32>
    %87 = arith.mulf %85, %86 : vector<128x64xf32>
    %88 = vector.broadcast %61 : vector<1x64xf32> to vector<128x64xf32>
    %89 = arith.addf %87, %88 : vector<128x64xf32>
    %cst_29 = arith.constant 0.000000e+00 : f32
    %90 = vector.broadcast %cst_29 : f32 to vector<128x64xf32>
    %91 = arith.maximumf %89, %90 : vector<128x64xf32>
    %c0_30 = arith.constant 0 : index
    %c0_31 = arith.constant 0 : index
    %92 = vector.load %arg6[%c0_30, %c0_31] : memref<64x64xf32, #tpu.memory_space<vmem>>, vector<64x64xf32>
    %cst_32 = arith.constant dense<0.000000e+00> : vector<128x64xf32>
    %93 = tpu.matmul %91, %92, %cst_32 {dimension_numbers = #tpu.dot_dimension_numbers<[1], [0], [0], [1], [0, 0, 1, 1], [], []>} : vector<128x64xf32>, vector<64x64xf32>, vector<128x64xf32> -> vector<128x64xf32>
    %c0_33 = arith.constant 0 : index
    %c0_34 = arith.constant 0 : index
    %94 = vector.load %arg7[%c0_33, %c0_34] : memref<1x64xf32, #tpu.memory_space<vmem>>, vector<1x64xf32>
    %95 = vector.broadcast %94 : vector<1x64xf32> to vector<128x64xf32>
    %96 = arith.addf %93, %95 : vector<128x64xf32>
    %c0_35 = arith.constant 0 : index
    %c0_36 = arith.constant 0 : index
    %97 = vector.load %arg12[%c0_35, %c0_36] : memref<1x64xf32, #tpu.memory_space<vmem>>, vector<1x64xf32>
    %c0_37 = arith.constant 0 : index
    %c0_38 = arith.constant 0 : index
    %98 = vector.load %arg13[%c0_37, %c0_38] : memref<1x64xf32, #tpu.memory_space<vmem>>, vector<1x64xf32>
    %99 = vector.shape_cast %96 : vector<128x64xf32> to vector<1x128x64xf32>
    %cst_39 = arith.constant dense<0.000000e+00> : vector<1xf32>
    %100 = vector.multi_reduction <add>, %99, %cst_39 [1, 2] : vector<1x128x64xf32> to vector<1xf32>
    %101 = vector.shape_cast %100 : vector<1xf32> to vector<1x1x1xf32>
    %102 = vector.extract %101[0, 0, 0] : f32 from vector<1x1x1xf32>
    %103 = vector.broadcast %102 : f32 to vector<1x1xf32>
    %cst_40 = arith.constant 8.192000e+03 : f32
    %104 = vector.broadcast %cst_40 : f32 to vector<1x1xf32>
    %105 = arith.divf %103, %104 : vector<1x1xf32>
    %106 = vector.broadcast %105 : vector<1x1xf32> to vector<128x64xf32>
    %107 = arith.subf %96, %106 : vector<128x64xf32>
    %108 = arith.mulf %107, %107 : vector<128x64xf32>
    %109 = vector.shape_cast %108 : vector<128x64xf32> to vector<1x128x64xf32>
    %cst_41 = arith.constant dense<0.000000e+00> : vector<1xf32>
    %110 = vector.multi_reduction <add>, %109, %cst_41 [1, 2] : vector<1x128x64xf32> to vector<1xf32>
    %111 = vector.shape_cast %110 : vector<1xf32> to vector<1x1x1xf32>
    %112 = vector.extract %111[0, 0, 0] : f32 from vector<1x1x1xf32>
    %113 = vector.broadcast %112 : f32 to vector<1x1xf32>
    %cst_42 = arith.constant 8.192000e+03 : f32
    %114 = vector.broadcast %cst_42 : f32 to vector<1x1xf32>
    %115 = arith.divf %113, %114 : vector<1x1xf32>
    %116 = vector.broadcast %105 : vector<1x1xf32> to vector<128x64xf32>
    %117 = arith.subf %96, %116 : vector<128x64xf32>
    %cst_43 = arith.constant 9.99999974E-6 : f32
    %118 = vector.broadcast %cst_43 : f32 to vector<1x1xf32>
    %119 = arith.addf %115, %118 : vector<1x1xf32>
    %120 = math.rsqrt %119 : vector<1x1xf32>
    %121 = vector.broadcast %120 : vector<1x1xf32> to vector<128x64xf32>
    %122 = arith.mulf %117, %121 : vector<128x64xf32>
    %123 = vector.broadcast %97 : vector<1x64xf32> to vector<128x64xf32>
    %124 = arith.mulf %122, %123 : vector<128x64xf32>
    %125 = vector.broadcast %98 : vector<1x64xf32> to vector<128x64xf32>
    %126 = arith.addf %124, %125 : vector<128x64xf32>
    %cst_44 = arith.constant 0.000000e+00 : f32
    %127 = vector.broadcast %cst_44 : f32 to vector<128x64xf32>
    %128 = arith.maximumf %126, %127 : vector<128x64xf32>
    %c0_45 = arith.constant 0 : index
    %c0_46 = arith.constant 0 : index
    %129 = vector.load %arg8[%c0_45, %c0_46] : memref<64x128xf32, #tpu.memory_space<vmem>>, vector<64x128xf32>
    %cst_47 = arith.constant dense<0.000000e+00> : vector<128x128xf32>
    %130 = tpu.matmul %128, %129, %cst_47 {dimension_numbers = #tpu.dot_dimension_numbers<[1], [0], [0], [1], [0, 0, 1, 1], [], []>} : vector<128x64xf32>, vector<64x128xf32>, vector<128x128xf32> -> vector<128x128xf32>
    %c0_48 = arith.constant 0 : index
    %c0_49 = arith.constant 0 : index
    %131 = vector.load %arg9[%c0_48, %c0_49] : memref<1x128xf32, #tpu.memory_space<vmem>>, vector<1x128xf32>
    %132 = vector.broadcast %131 : vector<1x128xf32> to vector<128x128xf32>
    %133 = arith.addf %130, %132 : vector<128x128xf32>
    %c0_50 = arith.constant 0 : index
    %c0_51 = arith.constant 0 : index
    %134 = vector.load %arg14[%c0_50, %c0_51] : memref<1x128xf32, #tpu.memory_space<vmem>>, vector<1x128xf32>
    %c0_52 = arith.constant 0 : index
    %c0_53 = arith.constant 0 : index
    %135 = vector.load %arg15[%c0_52, %c0_53] : memref<1x128xf32, #tpu.memory_space<vmem>>, vector<1x128xf32>
    %136 = vector.shape_cast %133 : vector<128x128xf32> to vector<1x128x128xf32>
    %cst_54 = arith.constant dense<0.000000e+00> : vector<1xf32>
    %137 = vector.multi_reduction <add>, %136, %cst_54 [1, 2] : vector<1x128x128xf32> to vector<1xf32>
    %138 = vector.shape_cast %137 : vector<1xf32> to vector<1x1x1xf32>
    %139 = vector.extract %138[0, 0, 0] : f32 from vector<1x1x1xf32>
    %140 = vector.broadcast %139 : f32 to vector<1x1xf32>
    %cst_55 = arith.constant 1.638400e+04 : f32
    %141 = vector.broadcast %cst_55 : f32 to vector<1x1xf32>
    %142 = arith.divf %140, %141 : vector<1x1xf32>
    %143 = vector.broadcast %142 : vector<1x1xf32> to vector<128x128xf32>
    %144 = arith.subf %133, %143 : vector<128x128xf32>
    %145 = arith.mulf %144, %144 : vector<128x128xf32>
    %146 = vector.shape_cast %145 : vector<128x128xf32> to vector<1x128x128xf32>
    %cst_56 = arith.constant dense<0.000000e+00> : vector<1xf32>
    %147 = vector.multi_reduction <add>, %146, %cst_56 [1, 2] : vector<1x128x128xf32> to vector<1xf32>
    %148 = vector.shape_cast %147 : vector<1xf32> to vector<1x1x1xf32>
    %149 = vector.extract %148[0, 0, 0] : f32 from vector<1x1x1xf32>
    %150 = vector.broadcast %149 : f32 to vector<1x1xf32>
    %cst_57 = arith.constant 1.638400e+04 : f32
    %151 = vector.broadcast %cst_57 : f32 to vector<1x1xf32>
    %152 = arith.divf %150, %151 : vector<1x1xf32>
    %153 = vector.broadcast %142 : vector<1x1xf32> to vector<128x128xf32>
    %154 = arith.subf %133, %153 : vector<128x128xf32>
    %cst_58 = arith.constant 9.99999974E-6 : f32
    %155 = vector.broadcast %cst_58 : f32 to vector<1x1xf32>
    %156 = arith.addf %152, %155 : vector<1x1xf32>
    %157 = math.rsqrt %156 : vector<1x1xf32>
    %158 = vector.broadcast %157 : vector<1x1xf32> to vector<128x128xf32>
    %159 = arith.mulf %154, %158 : vector<128x128xf32>
    %160 = vector.broadcast %134 : vector<1x128xf32> to vector<128x128xf32>
    %161 = arith.mulf %159, %160 : vector<128x128xf32>
    %162 = vector.broadcast %135 : vector<1x128xf32> to vector<128x128xf32>
    %163 = arith.addf %161, %162 : vector<128x128xf32>
    %cst_59 = arith.constant 0.000000e+00 : f32
    %164 = vector.broadcast %cst_59 : f32 to vector<128x128xf32>
    %165 = arith.maximumf %163, %164 : vector<128x128xf32>
    %c0_60 = arith.constant 0 : index
    %c0_61 = arith.constant 0 : index
    %166 = vector.load %arg10[%c0_60, %c0_61] : memref<128x256xf32, #tpu.memory_space<vmem>>, vector<128x256xf32>
    %cst_62 = arith.constant dense<0.000000e+00> : vector<128x256xf32>
    %167 = tpu.matmul %165, %166, %cst_62 {dimension_numbers = #tpu.dot_dimension_numbers<[1], [0], [0], [1], [0, 0, 1, 1], [], []>} : vector<128x128xf32>, vector<128x256xf32>, vector<128x256xf32> -> vector<128x256xf32>
    %c0_63 = arith.constant 0 : index
    %c0_64 = arith.constant 0 : index
    %168 = vector.load %arg11[%c0_63, %c0_64] : memref<1x256xf32, #tpu.memory_space<vmem>>, vector<1x256xf32>
    %169 = vector.broadcast %168 : vector<1x256xf32> to vector<128x256xf32>
    %170 = arith.addf %167, %169 : vector<128x256xf32>
    %c0_65 = arith.constant 0 : index
    %c0_66 = arith.constant 0 : index
    %171 = vector.load %arg16[%c0_65, %c0_66] : memref<1x256xf32, #tpu.memory_space<vmem>>, vector<1x256xf32>
    %c0_67 = arith.constant 0 : index
    %c0_68 = arith.constant 0 : index
    %172 = vector.load %arg17[%c0_67, %c0_68] : memref<1x256xf32, #tpu.memory_space<vmem>>, vector<1x256xf32>
    %173 = vector.shape_cast %170 : vector<128x256xf32> to vector<1x128x256xf32>
    %cst_69 = arith.constant dense<0.000000e+00> : vector<1xf32>
    %174 = vector.multi_reduction <add>, %173, %cst_69 [1, 2] : vector<1x128x256xf32> to vector<1xf32>
    %175 = vector.shape_cast %174 : vector<1xf32> to vector<1x1x1xf32>
    %176 = vector.extract %175[0, 0, 0] : f32 from vector<1x1x1xf32>
    %177 = vector.broadcast %176 : f32 to vector<1x1xf32>
    %cst_70 = arith.constant 3.276800e+04 : f32
    %178 = vector.broadcast %cst_70 : f32 to vector<1x1xf32>
    %179 = arith.divf %177, %178 : vector<1x1xf32>
    %180 = vector.broadcast %179 : vector<1x1xf32> to vector<128x256xf32>
    %181 = arith.subf %170, %180 : vector<128x256xf32>
    %182 = arith.mulf %181, %181 : vector<128x256xf32>
    %183 = vector.shape_cast %182 : vector<128x256xf32> to vector<1x128x256xf32>
    %cst_71 = arith.constant dense<0.000000e+00> : vector<1xf32>
    %184 = vector.multi_reduction <add>, %183, %cst_71 [1, 2] : vector<1x128x256xf32> to vector<1xf32>
    %185 = vector.shape_cast %184 : vector<1xf32> to vector<1x1x1xf32>
    %186 = vector.extract %185[0, 0, 0] : f32 from vector<1x1x1xf32>
    %187 = vector.broadcast %186 : f32 to vector<1x1xf32>
    %cst_72 = arith.constant 3.276800e+04 : f32
    %188 = vector.broadcast %cst_72 : f32 to vector<1x1xf32>
    %189 = arith.divf %187, %188 : vector<1x1xf32>
    %190 = vector.broadcast %179 : vector<1x1xf32> to vector<128x256xf32>
    %191 = arith.subf %170, %190 : vector<128x256xf32>
    %cst_73 = arith.constant 9.99999974E-6 : f32
    %192 = vector.broadcast %cst_73 : f32 to vector<1x1xf32>
    %193 = arith.addf %189, %192 : vector<1x1xf32>
    %194 = math.rsqrt %193 : vector<1x1xf32>
    %195 = vector.broadcast %194 : vector<1x1xf32> to vector<128x256xf32>
    %196 = arith.mulf %191, %195 : vector<128x256xf32>
    %197 = vector.broadcast %171 : vector<1x256xf32> to vector<128x256xf32>
    %198 = arith.mulf %196, %197 : vector<128x256xf32>
    %199 = vector.broadcast %172 : vector<1x256xf32> to vector<128x256xf32>
    %200 = arith.addf %198, %199 : vector<128x256xf32>
    %cst_74 = arith.constant 0.000000e+00 : f32
    %201 = vector.broadcast %cst_74 : f32 to vector<128x256xf32>
    %202 = arith.maximumf %200, %201 : vector<128x256xf32>
    %cst_75 = arith.constant dense<0xFF800000> : vector<256xf32>
    %203 = vector.multi_reduction <maximumf>, %202, %cst_75 [0] : vector<128x256xf32> to vector<256xf32>
    %204 = vector.shape_cast %203 : vector<256xf32> to vector<1x256xf32>
    %c0_76 = arith.constant 0 : index
    %c0_77 = arith.constant 0 : index
    %c0_78 = arith.constant 0 : index
    %205 = vector.load %arg18[%c0_76, %c0_77, %c0_78] : memref<1x1x256xf32, #tpu.memory_space<vmem>>, vector<1x1x256xf32>
    %206 = vector.shape_cast %205 : vector<1x1x256xf32> to vector<1x256xf32>
    %207 = vector.shape_cast %204 : vector<1x256xf32> to vector<1x1x256xf32>
    tpu.vector_store %arg18[%c0_76, %c0_77, %c0_78], %207 {strides = array<i32>} : memref<1x1x256xf32, #tpu.memory_space<vmem>>, vector<1x1x256xf32>,
    return
  }
  func.func @transform_0(%arg0: i32) -> (i32, i32, i32) {
    %c0_i32 = arith.constant 0 : i32
    %c0_i32_0 = arith.constant 0 : i32
    %c0_i32_1 = arith.constant 0 : i32
    return %arg0, %c0_i32, %c0_i32_0 : i32, i32, i32
  }
  func.func @transform_1(%arg0: i32) -> (i32, i32) {
    %c0_i32 = arith.constant 0 : i32
    %c0_i32_0 = arith.constant 0 : i32
    %c0_i32_1 = arith.constant 0 : i32
    return %c0_i32, %c0_i32_0 : i32, i32
  }
  func.func @transform_2(%arg0: i32) -> (i32, i32) {
    %c0_i32 = arith.constant 0 : i32
    %c0_i32_0 = arith.constant 0 : i32
    %c0_i32_1 = arith.constant 0 : i32
    return %c0_i32, %c0_i32_0 : i32, i32
  }
  func.func @transform_3(%arg0: i32) -> (i32, i32) {
    %c0_i32 = arith.constant 0 : i32
    %c0_i32_0 = arith.constant 0 : i32
    %c0_i32_1 = arith.constant 0 : i32
    return %c0_i32, %c0_i32_0 : i32, i32
  }
  func.func @transform_4(%arg0: i32) -> (i32, i32) {
    %c0_i32 = arith.constant 0 : i32
    %c0_i32_0 = arith.constant 0 : i32
    %c0_i32_1 = arith.constant 0 : i32
    return %c0_i32, %c0_i32_0 : i32, i32
  }
  func.func @transform_5(%arg0: i32) -> (i32, i32) {
    %c0_i32 = arith.constant 0 : i32
    %c0_i32_0 = arith.constant 0 : i32
    %c0_i32_1 = arith.constant 0 : i32
    return %c0_i32, %c0_i32_0 : i32, i32
  }
  func.func @transform_6(%arg0: i32) -> (i32, i32) {
    %c0_i32 = arith.constant 0 : i32
    %c0_i32_0 = arith.constant 0 : i32
    %c0_i32_1 = arith.constant 0 : i32
    return %c0_i32, %c0_i32_0 : i32, i32
  }
  func.func @transform_7(%arg0: i32) -> (i32, i32) {
    %c0_i32 = arith.constant 0 : i32
    %c0_i32_0 = arith.constant 0 : i32
    %c0_i32_1 = arith.constant 0 : i32
    return %c0_i32, %c0_i32_0 : i32, i32
  }
  func.func @transform_8(%arg0: i32) -> (i32, i32) {
    %c0_i32 = arith.constant 0 : i32
    %c0_i32_0 = arith.constant 0 : i32
    %c0_i32_1 = arith.constant 0 : i32
    return %c0_i32, %c0_i32_0 : i32, i32
  }
  func.func @transform_9(%arg0: i32) -> (i32, i32) {
    %c0_i32 = arith.constant 0 : i32
    %c0_i32_0 = arith.constant 0 : i32
    %c0_i32_1 = arith.constant 0 : i32
    return %c0_i32, %c0_i32_0 : i32, i32
  }
  func.func @transform_10(%arg0: i32) -> (i32, i32) {
    %c0_i32 = arith.constant 0 : i32
    %c0_i32_0 = arith.constant 0 : i32
    %c0_i32_1 = arith.constant 0 : i32
    return %c0_i32, %c0_i32_0 : i32, i32
  }
  func.func @transform_11(%arg0: i32) -> (i32, i32) {
    %c0_i32 = arith.constant 0 : i32
    %c0_i32_0 = arith.constant 0 : i32
    %c0_i32_1 = arith.constant 0 : i32
    return %c0_i32, %c0_i32_0 : i32, i32
  }
  func.func @transform_12(%arg0: i32) -> (i32, i32) {
    %c0_i32 = arith.constant 0 : i32
    %c0_i32_0 = arith.constant 0 : i32
    %c0_i32_1 = arith.constant 0 : i32
    return %c0_i32, %c0_i32_0 : i32, i32
  }
  func.func @transform_13(%arg0: i32) -> (i32, i32) {
    %c0_i32 = arith.constant 0 : i32
    %c0_i32_0 = arith.constant 0 : i32
    %c0_i32_1 = arith.constant 0 : i32
    return %c0_i32, %c0_i32_0 : i32, i32
  }
  func.func @transform_14(%arg0: i32) -> (i32, i32) {
    %c0_i32 = arith.constant 0 : i32
    %c0_i32_0 = arith.constant 0 : i32
    %c0_i32_1 = arith.constant 0 : i32
    return %c0_i32, %c0_i32_0 : i32, i32
  }
  func.func @transform_15(%arg0: i32) -> (i32, i32) {
    %c0_i32 = arith.constant 0 : i32
    %c0_i32_0 = arith.constant 0 : i32
    %c0_i32_1 = arith.constant 0 : i32
    return %c0_i32, %c0_i32_0 : i32, i32
  }
  func.func @transform_16(%arg0: i32) -> (i32, i32) {
    %c0_i32 = arith.constant 0 : i32
    %c0_i32_0 = arith.constant 0 : i32
    %c0_i32_1 = arith.constant 0 : i32
    return %c0_i32, %c0_i32_0 : i32, i32
  }
  func.func @transform_17(%arg0: i32) -> (i32, i32, i32) {
    %c0_i32 = arith.constant 0 : i32
    %c0_i32_0 = arith.constant 0 : i32
    %c0_i32_1 = arith.constant 0 : i32
    return %arg0, %c0_i32, %c0_i32_0 : i32, i32, i32
  }
}

</mosaic_0001>

<llo_original>
// kernel: tpu_custom_call.1
$region0: #{tpu_custom_call.1}
  #allocation0 [shape = 'u32[]', space=smem, size = 0x4, offset = 0x4, fixed_abs, tag = 'smem constant byte address 0x4 - core index']
  #allocation1 [shape = 'u32[72,128]{1,0:T(1,128)}', space=vmem, size = 0x9000, scoped, tag = 'internal scratch']
  %s0 = inlined_call_operand.vmem [shape: f32[2,128,3], index: 0, kind: input, shape index: {}]
  %s1 = inlined_call_operand.vmem [shape: f32[3,64], index: 1, kind: input, shape index: {}]
  %s2 = inlined_call_operand.vmem [shape: f32[1,64], index: 2, kind: input, shape index: {}]
  %s3 = inlined_call_operand.hbm [shape: f32[64,64], index: 3, kind: input, shape index: {}]
  %s4 = inlined_call_operand.vmem [shape: f32[1,64], index: 4, kind: input, shape index: {}]
  %s5 = inlined_call_operand.hbm [shape: f32[64,64], index: 5, kind: input, shape index: {}]
  %s6 = inlined_call_operand.vmem [shape: f32[1,64], index: 6, kind: input, shape index: {}]
  %s7 = inlined_call_operand.hbm [shape: f32[64,128], index: 7, kind: input, shape index: {}]
  %s8 = inlined_call_operand.vmem [shape: f32[1,128], index: 8, kind: input, shape index: {}]
  %s9 = inlined_call_operand.vmem [shape: f32[128,256], index: 9, kind: input, shape index: {}]
  %s10 = inlined_call_operand.vmem [shape: f32[1,256], index: 10, kind: input, shape index: {}]
  %s11 = inlined_call_operand.hbm [shape: f32[1,64], index: 11, kind: input, shape index: {}]
  %s12 = inlined_call_operand.vmem [shape: f32[1,64], index: 12, kind: input, shape index: {}]
  %s13 = inlined_call_operand.vmem [shape: f32[1,128], index: 13, kind: input, shape index: {}]
  %s14 = inlined_call_operand.vmem [shape: f32[1,128], index: 14, kind: input, shape index: {}]
  %s15 = inlined_call_operand.vmem [shape: f32[1,256], index: 15, kind: input, shape index: {}]
  %s16 = inlined_call_operand.vmem [shape: f32[1,256], index: 16, kind: input, shape index: {}]
  %s17 = inlined_call_operand.hbm [shape: f32[2,1,256], index: 17, kind: output, shape index: {}]
  %s18 = sld [smem:[#allocation0]]
  $region117: #{tpu_custom_call.1} parent=0
    _
  %s20 = ssub.s32 1, %s18
  %s21 = scalar_select 0, %s20, %s18
  $region1: #{tpu_custom_call.1} parent=0
    #allocation2 [shape = 'u8[32768]{0}', space=vmem, size = 0x8000, scoped, tag = 'input window, operand 3, single buffered']
    #allocation3 [shape = 's32[2]{0}', space=sflag, size = 0x8, scoped, tag = 'scoped memory for tpu_custom_call.1']
    #allocation4 [shape = 's32[2]{0}', space=sflag, size = 0x8, scoped, tag = 'scoped memory for tpu_custom_call.1']
    #allocation5 [shape = 'u8[32768]{0}', space=vmem, size = 0x8000, scoped, tag = 'input window, operand 5, single buffered']
    #allocation6 [shape = 's32[1]{0}', space=sflag, size = 0x4, scoped, tag = 'scoped memory for tpu_custom_call.1']
    #allocation7 [shape = 'u8[32768]{0}', space=vmem, size = 0x8000, scoped, tag = 'input window, operand 7, single buffered']
    #allocation8 [shape = 'u8[512]{0}', space=vmem, size = 0x400, scoped, tag = 'input window, operand 11, single buffered']
    #allocation9 [shape = 's32[1]{0}', space=sflag, size = 0x4, scoped, tag = 'scoped memory for tpu_custom_call.1']
    #allocation10 [shape = 'u8[2048]{0}', space=vmem, size = 0x800, scoped, tag = 'output window, operand 0']
    %22 = vsyncpa [#allocation3], 0
    %23 = vsyncpa [#allocation6], 0
    %24 = vsyncpa [#allocation9], 0
    %25 = vsyncpa [#allocation4], 0
    %s26 = scalar_lea.sflag [#allocation4], 1
    %27 = vsyncpa %s26, 0
    loop: start=0, step=1, limit=4
    $region2: #{tpu_custom_call.1} parent=1 // loop_pre_header
      _
    $region3: #{tpu_custom_call.1} parent=1 // loop_header
      %s29 = sphi 0, %s33
      %p30 = scmp.ge.s32.totalorder %s29, 4
      %s39 = sphi 0, %s41
      %s42 = sphi 0, %s39
      %s43 = sphi 0, %s42
      %s59 = sphi 0, %s43
      %s63 = sphi 0, %s63
      %s65 = sphi 0, %s63
      %s66 = sphi 0, %s65
      %s80 = sphi 0, %s66
      %s84 = sphi 0, %s84
      %s86 = sphi 0, %s84
      %s87 = sphi 0, %s86
      %s101 = sphi 0, %s87
      %s105 = sphi 0, %s105
      %s107 = sphi 0, %s105
      %s108 = sphi 0, %s107
      %s122 = sphi 0, %s108
      %s126 = sphi 0, %s126
      %s128 = sphi 0, %s126
      %s129 = sphi 0, %s128
      %s143 = sphi 0, %s129
      %s147 = sphi 0, %s147
      %s149 = sphi 0, %s147
      %s150 = sphi 0, %s149
      %s164 = sphi 0, %s150
      %s168 = sphi 0, %s168
      %s170 = sphi 0, %s168
      %s171 = sphi 0, %s170
      %s185 = sphi 0, %s171
      %s189 = sphi 0, %s189
      %s191 = sphi 0, %s189
      %s192 = sphi 0, %s191
      %s206 = sphi 0, %s192
      %s210 = sphi 0, %s210
      %s212 = sphi 0, %s210
      %s213 = sphi 0, %s212
      %s227 = sphi 0, %s213
      %s231 = sphi 0, %s231
      %s233 = sphi 0, %s231
      %s234 = sphi 0, %s233
      %s248 = sphi 0, %s234
      %s252 = sphi 0, %s252
      %s254 = sphi 0, %s252
      %s255 = sphi 0, %s254
      %s269 = sphi 0, %s255
      %s273 = sphi 0, %s273
      %s275 = sphi 0, %s273
      %s276 = sphi 0, %s275
      %s290 = sphi 0, %s276
      %s294 = sphi 0, %s294
      %s296 = sphi 0, %s294
      %s297 = sphi 0, %s296
      %s311 = sphi 0, %s297
      %s315 = sphi 0, %s315
      %s317 = sphi 0, %s315
      %s318 = sphi 0, %s317
      %s332 = sphi 0, %s318
      %s336 = sphi 0, %s336
      %s338 = sphi 0, %s336
      %s339 = sphi 0, %s338
      %s353 = sphi 0, %s339
      %s357 = sphi 0, %s357
      %s359 = sphi 0, %s357
      %s360 = sphi 0, %s359
      %s374 = sphi 0, %s360
      %s378 = sphi 0, %s378
      %s380 = sphi 0, %s378
      %s381 = sphi 0, %s380
      %s395 = sphi 0, %s381
      %s401 = sphi 0, %s403
      %s404 = sphi 0, %s401
      %s405 = sphi 0, %s404
      %s421 = sphi 0, %s405
    $region4: #{tpu_custom_call.1} parent=1 // loop_header_branch
      %32 = sbr.rel (%p30) target = $region8
    $region5: #{tpu_custom_call.1} parent=1 // loop_body
      %s34 = ssub.s32 %s29, 1
      %s35 = ssub.s32 %s29, 2
      %s36 = sadd.s32 %s29, 1
      %s37 = ssub.s32 %s29, %s36
      %p38 = scmp.eq.s32.totalorder %s37, 0
      %s40 = sadd.s32 %s39, 1
      %s41 = scalar_select %p38, %s39, %s40
      %p44 = pneg %p38
      %p45 = scmp.eq.s32.totalorder %s29, 1
      %p46 = por %p44, %p45
      %p47 = scmp.ne.s32.totalorder %s39, %s42
      %p48 = scmp.eq.s32.totalorder %s29, 0
      %p49 = por %p47, %p48
      %p50 = scmp.ne.s32.totalorder %s39, %s42
      %p51 = scmp.eq.s32.totalorder %s34, 1
      %p52 = por %p50, %p51
      %p53 = scmp.ne.s32.totalorder %s42, %s43
      %p54 = scmp.eq.s32.totalorder %s34, 0
      %p55 = por %p53, %p54
      %p56 = scmp.ne.s32.totalorder %s42, %s43
      %p57 = scmp.eq.s32.totalorder %s35, 1
      %p58 = por %p56, %p57
      %p60 = scmp.ne.s32.totalorder %s43, %s59
      %p61 = scmp.eq.s32.totalorder %s35, 0
      %p62 = por %p60, %p61
      %s64 = sadd.s32 %s63, 1
      %p67 = scmp.eq.s32.totalorder %s29, 1
      %p68 = scmp.ne.s32.totalorder %s63, %s65
      %p69 = scmp.eq.s32.totalorder %s29, 0
      %p70 = por %p68, %p69
      %p71 = scmp.ne.s32.totalorder %s63, %s65
      %p72 = scmp.eq.s32.totalorder %s34, 1
      %p73 = por %p71, %p72
      %p74 = scmp.ne.s32.totalorder %s65, %s66
      %p75 = scmp.eq.s32.totalorder %s34, 0
      %p76 = por %p74, %p75
      %p77 = scmp.ne.s32.totalorder %s65, %s66
      %p78 = scmp.eq.s32.totalorder %s35, 1
      %p79 = por %p77, %p78
      %p81 = scmp.ne.s32.totalorder %s66, %s80
      %p82 = scmp.eq.s32.totalorder %s35, 0
      %p83 = por %p81, %p82
      %s85 = sadd.s32 %s84, 1
      %p88 = scmp.eq.s32.totalorder %s29, 1
      %p89 = scmp.ne.s32.totalorder %s84, %s86
      %p90 = scmp.eq.s32.totalorder %s29, 0
      %p91 = por %p89, %p90
      %p92 = scmp.ne.s32.totalorder %s84, %s86
      %p93 = scmp.eq.s32.totalorder %s34, 1
      %p94 = por %p92, %p93
      %p95 = scmp.ne.s32.totalorder %s86, %s87
      %p96 = scmp.eq.s32.totalorder %s34, 0
      %p97 = por %p95, %p96
      %p98 = scmp.ne.s32.totalorder %s86, %s87
      %p99 = scmp.eq.s32.totalorder %s35, 1
      %p100 = por %p98, %p99
      %p102 = scmp.ne.s32.totalorder %s87, %s101
      %p103 = scmp.eq.s32.totalorder %s35, 0
      %p104 = por %p102, %p103
      %s106 = sadd.s32 %s105, 1
      %p109 = scmp.eq.s32.totalorder %s29, 1
      %p110 = scmp.ne.s32.totalorder %s105, %s107
      %p111 = scmp.eq.s32.totalorder %s29, 0
      %p112 = por %p110, %p111
      %p113 = scmp.ne.s32.totalorder %s105, %s107
      %p114 = scmp.eq.s32.totalorder %s34, 1
      %p115 = por %p113, %p114
      %p116 = scmp.ne.s32.totalorder %s107, %s108
      %p117 = scmp.eq.s32.totalorder %s34, 0
      %p118 = por %p116, %p117
      %p119 = scmp.ne.s32.totalorder %s107, %s108
      %p120 = scmp.eq.s32.totalorder %s35, 1
      %p121 = por %p119, %p120
      %p123 = scmp.ne.s32.totalorder %s108, %s122
      %p124 = scmp.eq.s32.totalorder %s35, 0
      %p125 = por %p123, %p124
      %s127 = sadd.s32 %s126, 1
      %p130 = scmp.eq.s32.totalorder %s29, 1
      %p131 = scmp.ne.s32.totalorder %s126, %s128
      %p132 = scmp.eq.s32.totalorder %s29, 0
      %p133 = por %p131, %p132
      %p134 = scmp.ne.s32.totalorder %s126, %s128
      %p135 = scmp.eq.s32.totalorder %s34, 1
      %p136 = por %p134, %p135
      %p137 = scmp.ne.s32.totalorder %s128, %s129
      %p138 = scmp.eq.s32.totalorder %s34, 0
      %p139 = por %p137, %p138
      %p140 = scmp.ne.s32.totalorder %s128, %s129
      %p141 = scmp.eq.s32.totalorder %s35, 1
      %p142 = por %p140, %p141
      %p144 = scmp.ne.s32.totalorder %s129, %s143
      %p145 = scmp.eq.s32.totalorder %s35, 0
      %p146 = por %p144, %p145
      %s148 = sadd.s32 %s147, 1
      %p151 = scmp.eq.s32.totalorder %s29, 1
      %p152 = scmp.ne.s32.totalorder %s147, %s149
      %p153 = scmp.eq.s32.totalorder %s29, 0
      %p154 = por %p152, %p153
      %p155 = scmp.ne.s32.totalorder %s147, %s149
      %p156 = scmp.eq.s32.totalorder %s34, 1
      %p157 = por %p155, %p156
      %p158 = scmp.ne.s32.totalorder %s149, %s150
      %p159 = scmp.eq.s32.totalorder %s34, 0
      %p160 = por %p158, %p159
      %p161 = scmp.ne.s32.totalorder %s149, %s150
      %p162 = scmp.eq.s32.totalorder %s35, 1
      %p163 = por %p161, %p162
      %p165 = scmp.ne.s32.totalorder %s150, %s164
      %p166 = scmp.eq.s32.totalorder %s35, 0
      %p167 = por %p165, %p166
      %s169 = sadd.s32 %s168, 1
      %p172 = scmp.eq.s32.totalorder %s29, 1
      %p173 = scmp.ne.s32.totalorder %s168, %s170
      %p174 = scmp.eq.s32.totalorder %s29, 0
      %p175 = por %p173, %p174
      %p176 = scmp.ne.s32.totalorder %s168, %s170
      %p177 = scmp.eq.s32.totalorder %s34, 1
      %p178 = por %p176, %p177
      %p179 = scmp.ne.s32.totalorder %s170, %s171
      %p180 = scmp.eq.s32.totalorder %s34, 0
      %p181 = por %p179, %p180
      %p182 = scmp.ne.s32.totalorder %s170, %s171
      %p183 = scmp.eq.s32.totalorder %s35, 1
      %p184 = por %p182, %p183
      %p186 = scmp.ne.s32.totalorder %s171, %s185
      %p187 = scmp.eq.s32.totalorder %s35, 0
      %p188 = por %p186, %p187
      %s190 = sadd.s32 %s189, 1
      %p193 = scmp.eq.s32.totalorder %s29, 1
      %p194 = scmp.ne.s32.totalorder %s189, %s191
      %p195 = scmp.eq.s32.totalorder %s29, 0
      %p196 = por %p194, %p195
      %p197 = scmp.ne.s32.totalorder %s189, %s191
      %p198 = scmp.eq.s32.totalorder %s34, 1
      %p199 = por %p197, %p198
      %p200 = scmp.ne.s32.totalorder %s191, %s192
      %p201 = scmp.eq.s32.totalorder %s34, 0
      %p202 = por %p200, %p201
      %p203 = scmp.ne.s32.totalorder %s191, %s192
      %p204 = scmp.eq.s32.totalorder %s35, 1
      %p205 = por %p203, %p204
      %p207 = scmp.ne.s32.totalorder %s192, %s206
      %p208 = scmp.eq.s32.totalorder %s35, 0
      %p209 = por %p207, %p208
      %s211 = sadd.s32 %s210, 1
      %p214 = scmp.eq.s32.totalorder %s29, 1
      %p215 = scmp.ne.s32.totalorder %s210, %s212
      %p216 = scmp.eq.s32.totalorder %s29, 0
      %p217 = por %p215, %p216
      %p218 = scmp.ne.s32.totalorder %s210, %s212
      %p219 = scmp.eq.s32.totalorder %s34, 1
      %p220 = por %p218, %p219
      %p221 = scmp.ne.s32.totalorder %s212, %s213
      %p222 = scmp.eq.s32.totalorder %s34, 0
      %p223 = por %p221, %p222
      %p224 = scmp.ne.s32.totalorder %s212, %s213
      %p225 = scmp.eq.s32.totalorder %s35, 1
      %p226 = por %p224, %p225
      %p228 = scmp.ne.s32.totalorder %s213, %s227
      %p229 = scmp.eq.s32.totalorder %s35, 0
      %p230 = por %p228, %p229
      %s232 = sadd.s32 %s231, 1
      %p235 = scmp.eq.s32.totalorder %s29, 1
      %p236 = scmp.ne.s32.totalorder %s231, %s233
      %p237 = scmp.eq.s32.totalorder %s29, 0
      %p238 = por %p236, %p237
      %p239 = scmp.ne.s32.totalorder %s231, %s233
      %p240 = scmp.eq.s32.totalorder %s34, 1
      %p241 = por %p239, %p240
      %p242 = scmp.ne.s32.totalorder %s233, %s234
      %p243 = scmp.eq.s32.totalorder %s34, 0
      %p244 = por %p242, %p243
      %p245 = scmp.ne.s32.totalorder %s233, %s234
      %p246 = scmp.eq.s32.totalorder %s35, 1
      %p247 = por %p245, %p246
      %p249 = scmp.ne.s32.totalorder %s234, %s248
      %p250 = scmp.eq.s32.totalorder %s35, 0
      %p251 = por %p249, %p250
      %s253 = sadd.s32 %s252, 1
      %p256 = scmp.eq.s32.totalorder %s29, 1
      %p257 = scmp.ne.s32.totalorder %s252, %s254
      %p258 = scmp.eq.s32.totalorder %s29, 0
      %p259 = por %p257, %p258
      %p260 = scmp.ne.s32.totalorder %s252, %s254
      %p261 = scmp.eq.s32.totalorder %s34, 1
      %p262 = por %p260, %p261
      %p263 = scmp.ne.s32.totalorder %s254, %s255
      %p264 = scmp.eq.s32.totalorder %s34, 0
      %p265 = por %p263, %p264
      %p266 = scmp.ne.s32.totalorder %s254, %s255
      %p267 = scmp.eq.s32.totalorder %s35, 1
      %p268 = por %p266, %p267
      %p270 = scmp.ne.s32.totalorder %s255, %s269
      %p271 = scmp.eq.s32.totalorder %s35, 0
      %p272 = por %p270, %p271
      %s274 = sadd.s32 %s273, 1
      %p277 = scmp.eq.s32.totalorder %s29, 1
      %p278 = scmp.ne.s32.totalorder %s273, %s275
      %p279 = scmp.eq.s32.totalorder %s29, 0
      %p280 = por %p278, %p279
      %p281 = scmp.ne.s32.totalorder %s273, %s275
      %p282 = scmp.eq.s32.totalorder %s34, 1
      %p283 = por %p281, %p282
      %p284 = scmp.ne.s32.totalorder %s275, %s276
      %p285 = scmp.eq.s32.totalorder %s34, 0
      %p286 = por %p284, %p285
      %p287 = scmp.ne.s32.totalorder %s275, %s276
      %p288 = scmp.eq.s32.totalorder %s35, 1
      %p289 = por %p287, %p288
      %p291 = scmp.ne.s32.totalorder %s276, %s290
      %p292 = scmp.eq.s32.totalorder %s35, 0
      %p293 = por %p291, %p292
      %s295 = sadd.s32 %s294, 1
      %p298 = scmp.eq.s32.totalorder %s29, 1
      %p299 = scmp.ne.s32.totalorder %s294, %s296
      %p300 = scmp.eq.s32.totalorder %s29, 0
      %p301 = por %p299, %p300
      %p302 = scmp.ne.s32.totalorder %s294, %s296
      %p303 = scmp.eq.s32.totalorder %s34, 1
      %p304 = por %p302, %p303
      %p305 = scmp.ne.s32.totalorder %s296, %s297
      %p306 = scmp.eq.s32.totalorder %s34, 0
      %p307 = por %p305, %p306
      %p308 = scmp.ne.s32.totalorder %s296, %s297
      %p309 = scmp.eq.s32.totalorder %s35, 1
      %p310 = por %p308, %p309
      %p312 = scmp.ne.s32.totalorder %s297, %s311
      %p313 = scmp.eq.s32.totalorder %s35, 0
      %p314 = por %p312, %p313
      %s316 = sadd.s32 %s315, 1
      %p319 = scmp.eq.s32.totalorder %s29, 1
      %p320 = scmp.ne.s32.totalorder %s315, %s317
      %p321 = scmp.eq.s32.totalorder %s29, 0
      %p322 = por %p320, %p321
      %p323 = scmp.ne.s32.totalorder %s315, %s317
      %p324 = scmp.eq.s32.totalorder %s34, 1
      %p325 = por %p323, %p324
      %p326 = scmp.ne.s32.totalorder %s317, %s318
      %p327 = scmp.eq.s32.totalorder %s34, 0
      %p328 = por %p326, %p327
      %p329 = scmp.ne.s32.totalorder %s317, %s318
      %p330 = scmp.eq.s32.totalorder %s35, 1
      %p331 = por %p329, %p330
      %p333 = scmp.ne.s32.totalorder %s318, %s332
      %p334 = scmp.eq.s32.totalorder %s35, 0
      %p335 = por %p333, %p334
      %s337 = sadd.s32 %s336, 1
      %p340 = scmp.eq.s32.totalorder %s29, 1
      %p341 = scmp.ne.s32.totalorder %s336, %s338
      %p342 = scmp.eq.s32.totalorder %s29, 0
      %p343 = por %p341, %p342
      %p344 = scmp.ne.s32.totalorder %s336, %s338
      %p345 = scmp.eq.s32.totalorder %s34, 1
      %p346 = por %p344, %p345
      %p347 = scmp.ne.s32.totalorder %s338, %s339
      %p348 = scmp.eq.s32.totalorder %s34, 0
      %p349 = por %p347, %p348
      %p350 = scmp.ne.s32.totalorder %s338, %s339
      %p351 = scmp.eq.s32.totalorder %s35, 1
      %p352 = por %p350, %p351
      %p354 = scmp.ne.s32.totalorder %s339, %s353
      %p355 = scmp.eq.s32.totalorder %s35, 0
      %p356 = por %p354, %p355
      %s358 = sadd.s32 %s357, 1
      %p361 = scmp.eq.s32.totalorder %s29, 1
      %p362 = scmp.ne.s32.totalorder %s357, %s359
      %p363 = scmp.eq.s32.totalorder %s29, 0
      %p364 = por %p362, %p363
      %p365 = scmp.ne.s32.totalorder %s357, %s359
      %p366 = scmp.eq.s32.totalorder %s34, 1
      %p367 = por %p365, %p366
      %p368 = scmp.ne.s32.totalorder %s359, %s360
      %p369 = scmp.eq.s32.totalorder %s34, 0
      %p370 = por %p368, %p369
      %p371 = scmp.ne.s32.totalorder %s359, %s360
      %p372 = scmp.eq.s32.totalorder %s35, 1
      %p373 = por %p371, %p372
      %p375 = scmp.ne.s32.totalorder %s360, %s374
      %p376 = scmp.eq.s32.totalorder %s35, 0
      %p377 = por %p375, %p376
      %s379 = sadd.s32 %s378, 1
      %p382 = scmp.eq.s32.totalorder %s29, 1
      %p383 = scmp.ne.s32.totalorder %s378, %s380
      %p384 = scmp.eq.s32.totalorder %s29, 0
      %p385 = por %p383, %p384
      %p386 = scmp.ne.s32.totalorder %s378, %s380
      %p387 = scmp.eq.s32.totalorder %s34, 1
      %p388 = por %p386, %p387
      %p389 = scmp.ne.s32.totalorder %s380, %s381
      %p390 = scmp.eq.s32.totalorder %s34, 0
      %p391 = por %p389, %p390
      %p392 = scmp.ne.s32.totalorder %s380, %s381
      %p393 = scmp.eq.s32.totalorder %s35, 1
      %p394 = por %p392, %p393
      %p396 = scmp.ne.s32.totalorder %s381, %s395
      %p397 = scmp.eq.s32.totalorder %s35, 0
      %p398 = por %p396, %p397
      %s399 = ssub.s32 %s29, %s36
      %p400 = scmp.eq.s32.totalorder %s399, 0
      %s402 = sadd.s32 %s401, 1
      %s403 = scalar_select %p400, %s401, %s402
      %p406 = pneg %p400
      %p407 = scmp.eq.s32.totalorder %s29, 1
      %p408 = por %p406, %p407
      %p409 = scmp.ne.s32.totalorder %s401, %s404
      %p410 = scmp.eq.s32.totalorder %s29, 0
      %p411 = por %p409, %p410
      %p412 = scmp.ne.s32.totalorder %s401, %s404
      %p413 = scmp.eq.s32.totalorder %s34, 1
      %p414 = por %p412, %p413
      %p415 = scmp.ne.s32.totalorder %s404, %s405
      %p416 = scmp.eq.s32.totalorder %s34, 0
      %p417 = por %p415, %p416
      %p418 = scmp.ne.s32.totalorder %s404, %s405
      %p419 = scmp.eq.s32.totalorder %s35, 1
      %p420 = por %p418, %p419
      %p422 = scmp.ne.s32.totalorder %s405, %s421
      %p423 = scmp.eq.s32.totalorder %s35, 0
      %p424 = por %p422, %p423
      %p425 = scmp.le.s32.totalorder 1, %s29
      %p426 = scmp.lt.s32.totalorder %s29, 3
      %p427 = pnand %p425, %p426
      %p428 = pneg %p427
      // Predicated region
      $region9: #{tpu_custom_call.1} parent=5 // pred_check
        _
      $region10: #{tpu_custom_call.1} parent=5 // pred_check_branch
        %430 = sbr.rel (%p427) target = $region12
      $region11: #{tpu_custom_call.1} parent=5 // pred_region
        %s431 = ssub.s32 %s29, 1
        // Predicated region
        $region13: #{tpu_custom_call.1} parent=11 // pred_check
          %p432 = pneg %p76
        $region14: #{tpu_custom_call.1} parent=11 // pred_check_branch
          %434 = sbr.rel (%p432) target = $region16
        $region15: #{tpu_custom_call.1} parent=11 // pred_region
          _
        $region16: #{tpu_custom_call.1} parent=11 // pred_fallthru
          _
        // Predicated region
        $region17: #{tpu_custom_call.1} parent=11 // pred_check
          %p435 = pneg %p97
        $region18: #{tpu_custom_call.1} parent=11 // pred_check_branch
          %437 = sbr.rel (%p435) target = $region20
        $region19: #{tpu_custom_call.1} parent=11 // pred_region
          _
        $region20: #{tpu_custom_call.1} parent=11 // pred_fallthru
          _
        // Predicated region
        $region21: #{tpu_custom_call.1} parent=11 // pred_check
          %p438 = pneg %p118
        $region22: #{tpu_custom_call.1} parent=11 // pred_check_branch
          %440 = sbr.rel (%p438) target = $region24
        $region23: #{tpu_custom_call.1} parent=11 // pred_region
          %442 = vsyncadd [#allocation3], 0
          %s443 = sshll.u32 %s3, 4
          %s444 = int_to_ptr.hbm [resolvable:$true] %s443
          %s445 = sshll.u32 [#allocation2], 4
          %s446 = int_to_ptr.vmem [resolvable:$true] %s445
          %451 = dma.hbm_to_vmem [thread:$0]  %s444, 1024, %s446, [#allocation3], 128, 128, 8
        $region24: #{tpu_custom_call.1} parent=11 // pred_fallthru
          _
        // Predicated region
        $region25: #{tpu_custom_call.1} parent=11 // pred_check
          %p452 = pneg %p139
        $region26: #{tpu_custom_call.1} parent=11 // pred_check_branch
          %454 = sbr.rel (%p452) target = $region28
        $region27: #{tpu_custom_call.1} parent=11 // pred_region
          _
        $region28: #{tpu_custom_call.1} parent=11 // pred_fallthru
          _
        // Predicated region
        $region29: #{tpu_custom_call.1} parent=11 // pred_check
          %p455 = pneg %p160
        $region30: #{tpu_custom_call.1} parent=11 // pred_check_branch
          %457 = sbr.rel (%p455) target = $region32
        $region31: #{tpu_custom_call.1} parent=11 // pred_region
          %459 = vsyncadd [#allocation6], 0
          %s460 = sshll.u32 %s5, 4
          %s461 = int_to_ptr.hbm [resolvable:$true] %s460
          %s462 = sshll.u32 [#allocation5], 4
          %s463 = int_to_ptr.vmem [resolvable:$true] %s462
          %468 = dma.hbm_to_vmem [thread:$0]  %s461, 1024, %s463, [#allocation6], 128, 128, 8
        $region32: #{tpu_custom_call.1} parent=11 // pred_fallthru
          _
        // Predicated region
        $region33: #{tpu_custom_call.1} parent=11 // pred_check
          %p469 = pneg %p181
        $region34: #{tpu_custom_call.1} parent=11 // pred_check_branch
          %471 = sbr.rel (%p469) target = $region36
        $region35: #{tpu_custom_call.1} parent=11 // pred_region
          _
        $region36: #{tpu_custom_call.1} parent=11 // pred_fallthru
          _
        // Predicated region
        $region37: #{tpu_custom_call.1} parent=11 // pred_check
          %p472 = pneg %p202
        $region38: #{tpu_custom_call.1} parent=11 // pred_check_branch
          %474 = sbr.rel (%p472) target = $region40
        $region39: #{tpu_custom_call.1} parent=11 // pred_region
          %476 = vsyncadd [#allocation6], 0
          %s477 = sshll.u32 %s7, 4
          %s478 = int_to_ptr.hbm [resolvable:$true] %s477
          %s479 = sshll.u32 [#allocation7], 4
          %s480 = int_to_ptr.vmem [resolvable:$true] %s479
          %485 = dma.hbm_to_vmem [thread:$0]  %s478, 1024, %s480, [#allocation6], 128, 128, 8
        $region40: #{tpu_custom_call.1} parent=11 // pred_fallthru
          _
        // Predicated region
        $region41: #{tpu_custom_call.1} parent=11 // pred_check
          %p486 = pneg %p223
        $region42: #{tpu_custom_call.1} parent=11 // pred_check_branch
          %488 = sbr.rel (%p486) target = $region44
        $region43: #{tpu_custom_call.1} parent=11 // pred_region
          _
        $region44: #{tpu_custom_call.1} parent=11 // pred_fallthru
          _
        // Predicated region
        $region45: #{tpu_custom_call.1} parent=11 // pred_check
          %p489 = pneg %p244
        $region46: #{tpu_custom_call.1} parent=11 // pred_check_branch
          %491 = sbr.rel (%p489) target = $region48
        $region47: #{tpu_custom_call.1} parent=11 // pred_region
          _
        $region48: #{tpu_custom_call.1} parent=11 // pred_fallthru
          _
        // Predicated region
        $region49: #{tpu_custom_call.1} parent=11 // pred_check
          %p492 = pneg %p265
        $region50: #{tpu_custom_call.1} parent=11 // pred_check_branch
          %494 = sbr.rel (%p492) target = $region52
        $region51: #{tpu_custom_call.1} parent=11 // pred_region
          _
        $region52: #{tpu_custom_call.1} parent=11 // pred_fallthru
          _
        // Predicated region
        $region53: #{tpu_custom_call.1} parent=11 // pred_check
          %p495 = pneg %p286
        $region54: #{tpu_custom_call.1} parent=11 // pred_check_branch
          %497 = sbr.rel (%p495) target = $region56
        $region55: #{tpu_custom_call.1} parent=11 // pred_region
          %499 = vsyncadd [#allocation9], 0
          %s501 = sshll.u32 %s11, 4
          %s502 = int_to_ptr.hbm [resolvable:$true] %s501
          %s503 = sshll.u32 [#allocation8], 4
          %s504 = int_to_ptr.vmem [resolvable:$true] %s503
          %506 = dma.hbm_to_vmem [thread:$0]  %s502, 16, %s504, [#allocation9]
        $region56: #{tpu_custom_call.1} parent=11 // pred_fallthru
          _
        // Predicated region
        $region57: #{tpu_custom_call.1} parent=11 // pred_check
          %p507 = pneg %p307
        $region58: #{tpu_custom_call.1} parent=11 // pred_check_branch
          %509 = sbr.rel (%p507) target = $region60
        $region59: #{tpu_custom_call.1} parent=11 // pred_region
          _
        $region60: #{tpu_custom_call.1} parent=11 // pred_fallthru
          _
        // Predicated region
        $region61: #{tpu_custom_call.1} parent=11 // pred_check
          %p510 = pneg %p328
        $region62: #{tpu_custom_call.1} parent=11 // pred_check_branch
          %512 = sbr.rel (%p510) target = $region64
        $region63: #{tpu_custom_call.1} parent=11 // pred_region
          _
        $region64: #{tpu_custom_call.1} parent=11 // pred_fallthru
          _
        // Predicated region
        $region65: #{tpu_custom_call.1} parent=11 // pred_check
          %p513 = pneg %p349
        $region66: #{tpu_custom_call.1} parent=11 // pred_check_branch
          %515 = sbr.rel (%p513) target = $region68
        $region67: #{tpu_custom_call.1} parent=11 // pred_region
          _
        $region68: #{tpu_custom_call.1} parent=11 // pred_fallthru
          _
        // Predicated region
        $region69: #{tpu_custom_call.1} parent=11 // pred_check
          %p516 = pneg %p370
        $region70: #{tpu_custom_call.1} parent=11 // pred_check_branch
          %518 = sbr.rel (%p516) target = $region72
        $region71: #{tpu_custom_call.1} parent=11 // pred_region
          _
        $region72: #{tpu_custom_call.1} parent=11 // pred_fallthru
          _
        // Predicated region
        $region73: #{tpu_custom_call.1} parent=11 // pred_check
          %p519 = pneg %p391
        $region74: #{tpu_custom_call.1} parent=11 // pred_check_branch
          %521 = sbr.rel (%p519) target = $region76
        $region75: #{tpu_custom_call.1} parent=11 // pred_region
          _
        $region76: #{tpu_custom_call.1} parent=11 // pred_fallthru
          _
      $region12: #{tpu_custom_call.1} parent=5 // pred_fallthru
        _
      %p522 = scmp.lt.s32.totalorder %s29, 2
      // Predicated region
      $region77: #{tpu_custom_call.1} parent=5 // pred_check
        %p523 = pneg %p522
      $region78: #{tpu_custom_call.1} parent=5 // pred_check_branch
        %525 = sbr.rel (%p523) target = $region80
      $region79: #{tpu_custom_call.1} parent=5 // pred_region
        // Predicated region
        $region81: #{tpu_custom_call.1} parent=79 // pred_check
          %p526 = pneg %p49
        $region82: #{tpu_custom_call.1} parent=79 // pred_check_branch
          %528 = sbr.rel (%p526) target = $region84
        $region83: #{tpu_custom_call.1} parent=79 // pred_region
          %p529 = scmp.lt.s32.totalorder %s29, 1
          %s530 = scalar_select %p529, %s29, 1
          %s531 = smul.addr %s530, 16
          %s532 = smul.addr %s531, 8
          %s533 = scalar_lea.vmem %s0, %s532
        $region84: #{tpu_custom_call.1} parent=79 // pred_fallthru
          _
      $region80: #{tpu_custom_call.1} parent=5 // pred_fallthru
        _
      %p534 = scmp.le.s32.totalorder 1, %s29
      %p535 = scmp.lt.s32.totalorder %s29, 3
      %p536 = pnand %p534, %p535
      %p537 = pneg %p536
      // Predicated region
      $region85: #{tpu_custom_call.1} parent=5 // pred_check
        _
      $region86: #{tpu_custom_call.1} parent=5 // pred_check_branch
        %539 = sbr.rel (%p536) target = $region88
      $region87: #{tpu_custom_call.1} parent=5 // pred_region
        %s540 = ssub.s32 %s29, 1
        // Predicated region
        $region89: #{tpu_custom_call.1} parent=87 // pred_check
          %p541 = pneg %p118
        $region90: #{tpu_custom_call.1} parent=87 // pred_check_branch
          %543 = sbr.rel (%p541) target = $region92
        $region91: #{tpu_custom_call.1} parent=87 // pred_region
          %545 = dma.done [#allocation3], 1024
        $region92: #{tpu_custom_call.1} parent=87 // pred_fallthru
          _
        // Predicated region
        $region93: #{tpu_custom_call.1} parent=87 // pred_check
          %p546 = pneg %p160
        $region94: #{tpu_custom_call.1} parent=87 // pred_check_branch
          %548 = sbr.rel (%p546) target = $region96
        $region95: #{tpu_custom_call.1} parent=87 // pred_region
          %550 = dma.done [#allocation6], 1024
        $region96: #{tpu_custom_call.1} parent=87 // pred_fallthru
          _
        // Predicated region
        $region97: #{tpu_custom_call.1} parent=87 // pred_check
          %p551 = pneg %p202
        $region98: #{tpu_custom_call.1} parent=87 // pred_check_branch
          %553 = sbr.rel (%p551) target = $region100
        $region99: #{tpu_custom_call.1} parent=87 // pred_region
          %555 = dma.done [#allocation6], 1024
        $region100: #{tpu_custom_call.1} parent=87 // pred_fallthru
          _
        // Predicated region
        $region101: #{tpu_custom_call.1} parent=87 // pred_check
          %p556 = pneg %p286
        $region102: #{tpu_custom_call.1} parent=87 // pred_check_branch
          %558 = sbr.rel (%p556) target = $region104
        $region103: #{tpu_custom_call.1} parent=87 // pred_region
          %560 = dma.done [#allocation9], 16
        $region104: #{tpu_custom_call.1} parent=87 // pred_fallthru
          _
        %p561 = scmp.lt.s32.totalorder %s34, 1
        %s562 = scalar_select %p561, %s34, 1
        %s563 = smul.addr %s562, 16
        %s564 = smul.addr %s563, 8
        %s565 = scalar_lea.vmem %s0, %s564
        %p566 = pneg %p55
        %p567 = pneg %p52
        %p568 = pneg %p76
        %p569 = pneg %p73
        %p570 = pneg %p97
        %p571 = pneg %p94
        %p572 = pneg %p118
        %p573 = pneg %p115
        %p574 = pneg %p139
        %p575 = pneg %p136
        %p576 = pneg %p160
        %p577 = pneg %p157
        %p578 = pneg %p181
        %p579 = pneg %p178
        %p580 = pneg %p202
        %p581 = pneg %p199
        %p582 = pneg %p223
        %p583 = pneg %p220
        %p584 = pneg %p244
        %p585 = pneg %p241
        %p586 = pneg %p265
        %p587 = pneg %p262
        %p588 = pneg %p286
        %p589 = pneg %p283
        %p590 = pneg %p307
        %p591 = pneg %p304
        %p592 = pneg %p328
        %p593 = pneg %p325
        %p594 = pneg %p349
        %p595 = pneg %p346
        %p596 = pneg %p370
        %p597 = pneg %p367
        %p598 = pneg %p391
        %p599 = pneg %p388
        %p600 = pneg %p417
        %p601 = pneg %p414
        %s602 = sand.u32 %s404, 1
        %s603 = scalar_lea.sflag [#allocation4], %s602
        %s604 = sand.u32 %s404, 1
        %s605 = smul.addr %s604, 2
        %s606 = scalar_lea.vmem [#allocation10], %s605
        %p607 = scmp.lt.s32.totalorder %s34, 1
        %s608 = scalar_select %p607, %s34, 1
        %s609 = smul.addr %s608, 16
        %s610 = smul.addr %s609, 8
        %s611 = scalar_lea.vmem %s0, %s610
        %v612 = vld [vmem:[%s611] sm:$0xff]
        %v613 = vld [vmem:[%s611 + $0x8] sm:$0xff]
        %v614 = vld [vmem:[%s611 + $0x10] sm:$0xff]
        %v615 = vld [vmem:[%s611 + $0x18] sm:$0xff]
        %v616 = vld [vmem:[%s611 + $0x20] sm:$0xff]
        %v617 = vld [vmem:[%s611 + $0x28] sm:$0xff]
        %v618 = vld [vmem:[%s611 + $0x30] sm:$0xff]
        %v619 = vld [vmem:[%s611 + $0x38] sm:$0xff]
        %v620 = vld [vmem:[%s611 + $0x40] sm:$0xff]
        %v621 = vld [vmem:[%s611 + $0x48] sm:$0xff]
        %v622 = vld [vmem:[%s611 + $0x50] sm:$0xff]
        %v623 = vld [vmem:[%s611 + $0x58] sm:$0xff]
        %v624 = vld [vmem:[%s611 + $0x60] sm:$0xff]
        %v625 = vld [vmem:[%s611 + $0x68] sm:$0xff]
        %v626 = vld [vmem:[%s611 + $0x70] sm:$0xff]
        %v627 = vld [vmem:[%s611 + $0x78] sm:$0xff]
        %v628 = vld [vmem:[%s1] sm:$0x7]
        %630 = vset.pattern.permute.xlu0 0
        %631 = vperm.xlu0 %630, %v612
        %v632 = vpop.permute.xlu0 %631
        %635 = vset.pattern.permute.xlu0 0
        %636 = vperm.xlu0 %635, %v613
        %v637 = vpop.permute.xlu0 %636
        %640 = vset.pattern.permute.xlu0 0
        %641 = vperm.xlu0 %640, %v614
        %v642 = vpop.permute.xlu0 %641
        %645 = vset.pattern.permute.xlu0 0
        %646 = vperm.xlu0 %645, %v615
        %v647 = vpop.permute.xlu0 %646
        %650 = vset.pattern.permute.xlu0 0
        %651 = vperm.xlu0 %650, %v616
        %v652 = vpop.permute.xlu0 %651
        %655 = vset.pattern.permute.xlu0 0
        %656 = vperm.xlu0 %655, %v617
        %v657 = vpop.permute.xlu0 %656
        %660 = vset.pattern.permute.xlu0 0
        %661 = vperm.xlu0 %660, %v618
        %v662 = vpop.permute.xlu0 %661
        %665 = vset.pattern.permute.xlu0 0
        %666 = vperm.xlu0 %665, %v619
        %v667 = vpop.permute.xlu0 %666
        %670 = vset.pattern.permute.xlu0 0
        %671 = vperm.xlu0 %670, %v620
        %v672 = vpop.permute.xlu0 %671
        %675 = vset.pattern.permute.xlu0 0
        %676 = vperm.xlu0 %675, %v621
        %v677 = vpop.permute.xlu0 %676
        %680 = vset.pattern.permute.xlu0 0
        %681 = vperm.xlu0 %680, %v622
        %v682 = vpop.permute.xlu0 %681
        %685 = vset.pattern.permute.xlu0 0
        %686 = vperm.xlu0 %685, %v623
        %v687 = vpop.permute.xlu0 %686
        %690 = vset.pattern.permute.xlu0 0
        %691 = vperm.xlu0 %690, %v624
        %v692 = vpop.permute.xlu0 %691
        %695 = vset.pattern.permute.xlu0 0
        %696 = vperm.xlu0 %695, %v625
        %v697 = vpop.permute.xlu0 %696
        %700 = vset.pattern.permute.xlu0 0
        %701 = vperm.xlu0 %700, %v626
        %v702 = vpop.permute.xlu0 %701
        %705 = vset.pattern.permute.xlu0 0
        %706 = vperm.xlu0 %705, %v627
        %v707 = vpop.permute.xlu0 %706
        %v709 = vperm.slane %v628, 0
        %v710 = vmul.f32 %v632, %v709
        %v711 = vmul.f32 %v637, %v709
        %v712 = vmul.f32 %v642, %v709
        %v713 = vmul.f32 %v647, %v709
        %v714 = vmul.f32 %v652, %v709
        %v715 = vmul.f32 %v657, %v709
        %v716 = vmul.f32 %v662, %v709
        %v717 = vmul.f32 %v667, %v709
        %v718 = vmul.f32 %v672, %v709
        %v719 = vmul.f32 %v677, %v709
        %v720 = vmul.f32 %v682, %v709
        %v721 = vmul.f32 %v687, %v709
        %v722 = vmul.f32 %v692, %v709
        %v723 = vmul.f32 %v697, %v709
        %v724 = vmul.f32 %v702, %v709
        %v725 = vmul.f32 %v707, %v709
        %726 = vset.pattern.permute.xlu0 1
        %727 = vperm.xlu0 %726, %v612
        %v728 = vpop.permute.xlu0 %727
        %730 = vset.pattern.permute.xlu0 1
        %731 = vperm.xlu0 %730, %v613
        %v732 = vpop.permute.xlu0 %731
        %734 = vset.pattern.permute.xlu0 1
        %735 = vperm.xlu0 %734, %v614
        %v736 = vpop.permute.xlu0 %735
        %738 = vset.pattern.permute.xlu0 1
        %739 = vperm.xlu0 %738, %v615
        %v740 = vpop.permute.xlu0 %739
        %742 = vset.pattern.permute.xlu0 1
        %743 = vperm.xlu0 %742, %v616
        %v744 = vpop.permute.xlu0 %743
        %746 = vset.pattern.permute.xlu0 1
        %747 = vperm.xlu0 %746, %v617
        %v748 = vpop.permute.xlu0 %747
        %750 = vset.pattern.permute.xlu0 1
        %751 = vperm.xlu0 %750, %v618
        %v752 = vpop.permute.xlu0 %751
        %754 = vset.pattern.permute.xlu0 1
        %755 = vperm.xlu0 %754, %v619
        %v756 = vpop.permute.xlu0 %755
        %758 = vset.pattern.permute.xlu0 1
        %759 = vperm.xlu0 %758, %v620
        %v760 = vpop.permute.xlu0 %759
        %762 = vset.pattern.permute.xlu0 1
        %763 = vperm.xlu0 %762, %v621
        %v764 = vpop.permute.xlu0 %763
        %766 = vset.pattern.permute.xlu0 1
        %767 = vperm.xlu0 %766, %v622
        %v768 = vpop.permute.xlu0 %767
        %770 = vset.pattern.permute.xlu0 1
        %771 = vperm.xlu0 %770, %v623
        %v772 = vpop.permute.xlu0 %771
        %774 = vset.pattern.permute.xlu0 1
        %775 = vperm.xlu0 %774, %v624
        %v776 = vpop.permute.xlu0 %775
        %778 = vset.pattern.permute.xlu0 1
        %779 = vperm.xlu0 %778, %v625
        %v780 = vpop.permute.xlu0 %779
        %782 = vset.pattern.permute.xlu0 1
        %783 = vperm.xlu0 %782, %v626
        %v784 = vpop.permute.xlu0 %783
        %786 = vset.pattern.permute.xlu0 1
        %787 = vperm.xlu0 %786, %v627
        %v788 = vpop.permute.xlu0 %787
        %v790 = vperm.slane %v628, 1
        %v791 = vmul.f32 %v728, %v790
        %v792 = vmul.f32 %v732, %v790
        %v793 = vmul.f32 %v736, %v790
        %v794 = vmul.f32 %v740, %v790
        %v795 = vmul.f32 %v744, %v790
        %v796 = vmul.f32 %v748, %v790
        %v797 = vmul.f32 %v752, %v790
        %v798 = vmul.f32 %v756, %v790
        %v799 = vmul.f32 %v760, %v790
        %v800 = vmul.f32 %v764, %v790
        %v801 = vmul.f32 %v768, %v790
        %v802 = vmul.f32 %v772, %v790
        %v803 = vmul.f32 %v776, %v790
        %v804 = vmul.f32 %v780, %v790
        %v805 = vmul.f32 %v784, %v790
        %v806 = vmul.f32 %v788, %v790
        %v807 = vadd.f32 %v710, %v791
        %v808 = vadd.f32 %v711, %v792
        %v809 = vadd.f32 %v712, %v793
        %v810 = vadd.f32 %v713, %v794
        %v811 = vadd.f32 %v714, %v795
        %v812 = vadd.f32 %v715, %v796
        %v813 = vadd.f32 %v716, %v797
        %v814 = vadd.f32 %v717, %v798
        %v815 = vadd.f32 %v718, %v799
        %v816 = vadd.f32 %v719, %v800
        %v817 = vadd.f32 %v720, %v801
        %v818 = vadd.f32 %v721, %v802
        %v819 = vadd.f32 %v722, %v803
        %v820 = vadd.f32 %v723, %v804
        %v821 = vadd.f32 %v724, %v805
        %v822 = vadd.f32 %v725, %v806
        %823 = vset.pattern.permute.xlu0 2
        %824 = vperm.xlu0 %823, %v612
        %v825 = vpop.permute.xlu0 %824
        %827 = vset.pattern.permute.xlu0 2
        %828 = vperm.xlu0 %827, %v613
        %v829 = vpop.permute.xlu0 %828
        %831 = vset.pattern.permute.xlu0 2
        %832 = vperm.xlu0 %831, %v614
        %v833 = vpop.permute.xlu0 %832
        %835 = vset.pattern.permute.xlu0 2
        %836 = vperm.xlu0 %835, %v615
        %v837 = vpop.permute.xlu0 %836
        %839 = vset.pattern.permute.xlu0 2
        %840 = vperm.xlu0 %839, %v616
        %v841 = vpop.permute.xlu0 %840
        %843 = vset.pattern.permute.xlu0 2
        %844 = vperm.xlu0 %843, %v617
        %v845 = vpop.permute.xlu0 %844
        %847 = vset.pattern.permute.xlu0 2
        %848 = vperm.xlu0 %847, %v618
        %v849 = vpop.permute.xlu0 %848
        %851 = vset.pattern.permute.xlu0 2
        %852 = vperm.xlu0 %851, %v619
        %v853 = vpop.permute.xlu0 %852
        %855 = vset.pattern.permute.xlu0 2
        %856 = vperm.xlu0 %855, %v620
        %v857 = vpop.permute.xlu0 %856
        %859 = vset.pattern.permute.xlu0 2
        %860 = vperm.xlu0 %859, %v621
        %v861 = vpop.permute.xlu0 %860
        %863 = vset.pattern.permute.xlu0 2
        %864 = vperm.xlu0 %863, %v622
        %v865 = vpop.permute.xlu0 %864
        %867 = vset.pattern.permute.xlu0 2
        %868 = vperm.xlu0 %867, %v623
        %v869 = vpop.permute.xlu0 %868
        %871 = vset.pattern.permute.xlu0 2
        %872 = vperm.xlu0 %871, %v624
        %v873 = vpop.permute.xlu0 %872
        %875 = vset.pattern.permute.xlu0 2
        %876 = vperm.xlu0 %875, %v625
        %v877 = vpop.permute.xlu0 %876
        %879 = vset.pattern.permute.xlu0 2
        %880 = vperm.xlu0 %879, %v626
        %v881 = vpop.permute.xlu0 %880
        %883 = vset.pattern.permute.xlu0 2
        %884 = vperm.xlu0 %883, %v627
        %v885 = vpop.permute.xlu0 %884
        %v887 = vperm.slane %v628, 2
        %v888 = vmul.f32 %v825, %v887
        %v889 = vmul.f32 %v829, %v887
        %v890 = vmul.f32 %v833, %v887
        %v891 = vmul.f32 %v837, %v887
        %v892 = vmul.f32 %v841, %v887
        %v893 = vmul.f32 %v845, %v887
        %v894 = vmul.f32 %v849, %v887
        %v895 = vmul.f32 %v853, %v887
        %v896 = vmul.f32 %v857, %v887
        %v897 = vmul.f32 %v861, %v887
        %v898 = vmul.f32 %v865, %v887
        %v899 = vmul.f32 %v869, %v887
        %v900 = vmul.f32 %v873, %v887
        %v901 = vmul.f32 %v877, %v887
        %v902 = vmul.f32 %v881, %v887
        %v903 = vmul.f32 %v885, %v887
        %v904 = vadd.f32 %v807, %v888
        %v905 = vadd.f32 %v808, %v889
        %v906 = vadd.f32 %v809, %v890
        %v907 = vadd.f32 %v810, %v891
        %v908 = vadd.f32 %v811, %v892
        %v909 = vadd.f32 %v812, %v893
        %v910 = vadd.f32 %v813, %v894
        %v911 = vadd.f32 %v814, %v895
        %v912 = vadd.f32 %v815, %v896
        %v913 = vadd.f32 %v816, %v897
        %v914 = vadd.f32 %v817, %v898
        %v915 = vadd.f32 %v818, %v899
        %v916 = vadd.f32 %v819, %v900
        %v917 = vadd.f32 %v820, %v901
        %v918 = vadd.f32 %v821, %v902
        %v919 = vadd.f32 %v822, %v903
        %v920 = vld [vmem:[%s2] sm:$0x1]
        %v922 = vperm.slane %v920, 0
        %v924 = vadd.f32 %v904, %v922
        %v925 = vadd.f32 %v905, %v922
        %v926 = vadd.f32 %v906, %v922
        %v927 = vadd.f32 %v907, %v922
        %v928 = vadd.f32 %v908, %v922
        %v929 = vadd.f32 %v909, %v922
        %v930 = vadd.f32 %v910, %v922
        %v931 = vadd.f32 %v911, %v922
        %v932 = vadd.f32 %v912, %v922
        %v933 = vadd.f32 %v913, %v922
        %v934 = vadd.f32 %v914, %v922
        %v935 = vadd.f32 %v915, %v922
        %v936 = vadd.f32 %v916, %v922
        %v937 = vadd.f32 %v917, %v922
        %v938 = vadd.f32 %v918, %v922
        %v939 = vadd.f32 %v919, %v922
        %v940 = vld [vmem:[#allocation8] sm:$0x1]
        %v941 = vld [vmem:[%s12] sm:$0x1]
        %vm942 = vcmask 523264
        %v943 = vsel %vm942, %v924, 0.0
        %v944 = vsel %vm942, %v925, 0.0
        %v945 = vadd.f32 %v943, %v944
        %v946 = vsel %vm942, %v926, 0.0
        %v947 = vadd.f32 %v945, %v946
        %v948 = vsel %vm942, %v927, 0.0
        %v949 = vadd.f32 %v947, %v948
        %v950 = vsel %vm942, %v928, 0.0
        %v951 = vadd.f32 %v949, %v950
        %v952 = vsel %vm942, %v929, 0.0
        %v953 = vadd.f32 %v951, %v952
        %v954 = vsel %vm942, %v930, 0.0
        %v955 = vadd.f32 %v953, %v954
        %v956 = vsel %vm942, %v931, 0.0
        %v957 = vadd.f32 %v955, %v956
        %v958 = vsel %vm942, %v932, 0.0
        %v959 = vadd.f32 %v957, %v958
        %v960 = vsel %vm942, %v933, 0.0
        %v961 = vadd.f32 %v959, %v960
        %v962 = vsel %vm942, %v934, 0.0
        %v963 = vadd.f32 %v961, %v962
        %v964 = vsel %vm942, %v935, 0.0
        %v965 = vadd.f32 %v963, %v964
        %v966 = vsel %vm942, %v936, 0.0
        %v967 = vadd.f32 %v965, %v966
        %v968 = vsel %vm942, %v937, 0.0
        %v969 = vadd.f32 %v967, %v968
        %v970 = vsel %vm942, %v938, 0.0
        %v971 = vadd.f32 %v969, %v970
        %v972 = vsel %vm942, %v939, 0.0
        %v973 = vadd.f32 %v971, %v972
        %974 = vadd.xlane.f32.xlu0 %v973
        %v975 = vpop.xlane.xlu0 %974
        %v976 = vrot.slane %v975, 4
        %v977 = vadd.f32 %v975, %v976
        %v978 = vrot.slane %v977, 2
        %v979 = vadd.f32 %v977, %v978
        %v980 = vrot.slane %v979, 1
        %v981 = vadd.f32 %v979, %v980
        %s982 = vtos %v981
        %v983 = vstv %s982
        %v984 = vrcp.pop 8192.0
        %v985 = vmul.f32 8192.0, %v984
        %v986 = vsub.f32 1.0, %v985
        %v987 = vmul.f32 %v984, %v986
        %v988 = vadd.f32 %v984, %v987
        %vm989 = vweird.f32 %v984
        %v990 = vsel %vm989, %v984, %v988
        %v991 = vmul.f32 %v983, %v990
        %v992 = vsub.f32 %v924, %v991
        %v993 = vsub.f32 %v925, %v991
        %v994 = vsub.f32 %v926, %v991
        %v995 = vsub.f32 %v927, %v991
        %v996 = vsub.f32 %v928, %v991
        %v997 = vsub.f32 %v929, %v991
        %v998 = vsub.f32 %v930, %v991
        %v999 = vsub.f32 %v931, %v991
        %v1000 = vsub.f32 %v932, %v991
        %v1001 = vsub.f32 %v933, %v991
        %v1002 = vsub.f32 %v934, %v991
        %v1003 = vsub.f32 %v935, %v991
        %v1004 = vsub.f32 %v936, %v991
        %v1005 = vsub.f32 %v937, %v991
        %v1006 = vsub.f32 %v938, %v991
        %v1007 = vsub.f32 %v939, %v991
        %v1008 = vmul.f32 %v992, %v992
        %v1009 = vmul.f32 %v993, %v993
        %v1010 = vmul.f32 %v994, %v994
        %v1011 = vmul.f32 %v995, %v995
        %v1012 = vmul.f32 %v996, %v996
        %v1013 = vmul.f32 %v997, %v997
        %v1014 = vmul.f32 %v998, %v998
        %v1015 = vmul.f32 %v999, %v999
        %v1016 = vmul.f32 %v1000, %v1000
        %v1017 = vmul.f32 %v1001, %v1001
        %v1018 = vmul.f32 %v1002, %v1002
        %v1019 = vmul.f32 %v1003, %v1003
        %v1020 = vmul.f32 %v1004, %v1004
        %v1021 = vmul.f32 %v1005, %v1005
        %v1022 = vmul.f32 %v1006, %v1006
        %v1023 = vmul.f32 %v1007, %v1007
        %v1024 = vsel %vm942, %v1008, 0.0
        %v1025 = vsel %vm942, %v1009, 0.0
        %v1026 = vadd.f32 %v1024, %v1025
        %v1027 = vsel %vm942, %v1010, 0.0
        %v1028 = vadd.f32 %v1026, %v1027
        %v1029 = vsel %vm942, %v1011, 0.0
        %v1030 = vadd.f32 %v1028, %v1029
        %v1031 = vsel %vm942, %v1012, 0.0
        %v1032 = vadd.f32 %v1030, %v1031
        %v1033 = vsel %vm942, %v1013, 0.0
        %v1034 = vadd.f32 %v1032, %v1033
        %v1035 = vsel %vm942, %v1014, 0.0
        %v1036 = vadd.f32 %v1034, %v1035
        %v1037 = vsel %vm942, %v1015, 0.0
        %v1038 = vadd.f32 %v1036, %v1037
        %v1039 = vsel %vm942, %v1016, 0.0
        %v1040 = vadd.f32 %v1038, %v1039
        %v1041 = vsel %vm942, %v1017, 0.0
        %v1042 = vadd.f32 %v1040, %v1041
        %v1043 = vsel %vm942, %v1018, 0.0
        %v1044 = vadd.f32 %v1042, %v1043
        %v1045 = vsel %vm942, %v1019, 0.0
        %v1046 = vadd.f32 %v1044, %v1045
        %v1047 = vsel %vm942, %v1020, 0.0
        %v1048 = vadd.f32 %v1046, %v1047
        %v1049 = vsel %vm942, %v1021, 0.0
        %v1050 = vadd.f32 %v1048, %v1049
        %v1051 = vsel %vm942, %v1022, 0.0
        %v1052 = vadd.f32 %v1050, %v1051
        %v1053 = vsel %vm942, %v1023, 0.0
        %v1054 = vadd.f32 %v1052, %v1053
        %1055 = vadd.xlane.f32.xlu0 %v1054
        %v1056 = vpop.xlane.xlu0 %1055
        %v1057 = vrot.slane %v1056, 4
        %v1058 = vadd.f32 %v1056, %v1057
        %v1059 = vrot.slane %v1058, 2
        %v1060 = vadd.f32 %v1058, %v1059
        %v1061 = vrot.slane %v1060, 1
        %v1062 = vadd.f32 %v1060, %v1061
        %s1063 = vtos %v1062
        %v1064 = vstv %s1063
        %v1065 = vmul.f32 %v1064, %v990
        %v1066 = vadd.f32 %v1065, 1e-05
        %v1067 = vrsqrt.pop %v1066
        %v1068 = vmul.f32 %v1067, %v1066
        %v1069 = vmul.f32 %v1068, %v1067
        %v1070 = vmul.f32 0.5, %v1069
        %v1071 = vsub.f32 1.5, %v1070
        %v1072 = vmul.f32 %v1067, %v1071
        %vm1073 = vweird.f32 %v1066
        %vm1074 = vweird.f32 %v1067
        %vm1075 = vmor %vm1073, %vm1074
        %v1076 = vsel %vm1075, %v1067, %v1072
        %v1077 = vmul.f32 %v992, %v1076
        %v1078 = vmul.f32 %v993, %v1076
        %v1079 = vmul.f32 %v994, %v1076
        %v1080 = vmul.f32 %v995, %v1076
        %v1081 = vmul.f32 %v996, %v1076
        %v1082 = vmul.f32 %v997, %v1076
        %v1083 = vmul.f32 %v998, %v1076
        %v1084 = vmul.f32 %v999, %v1076
        %v1085 = vmul.f32 %v1000, %v1076
        %v1086 = vmul.f32 %v1001, %v1076
        %v1087 = vmul.f32 %v1002, %v1076
        %v1088 = vmul.f32 %v1003, %v1076
        %v1089 = vmul.f32 %v1004, %v1076
        %v1090 = vmul.f32 %v1005, %v1076
        %v1091 = vmul.f32 %v1006, %v1076
        %v1092 = vmul.f32 %v1007, %v1076
        %v1094 = vperm.slane %v940, 0
        %v1096 = vmul.f32 %v1077, %v1094
        %v1097 = vmul.f32 %v1078, %v1094
        %v1098 = vmul.f32 %v1079, %v1094
        %v1099 = vmul.f32 %v1080, %v1094
        %v1100 = vmul.f32 %v1081, %v1094
        %v1101 = vmul.f32 %v1082, %v1094
        %v1102 = vmul.f32 %v1083, %v1094
        %v1103 = vmul.f32 %v1084, %v1094
        %v1104 = vmul.f32 %v1085, %v1094
        %v1105 = vmul.f32 %v1086, %v1094
        %v1106 = vmul.f32 %v1087, %v1094
        %v1107 = vmul.f32 %v1088, %v1094
        %v1108 = vmul.f32 %v1089, %v1094
        %v1109 = vmul.f32 %v1090, %v1094
        %v1110 = vmul.f32 %v1091, %v1094
        %v1111 = vmul.f32 %v1092, %v1094
        %v1113 = vperm.slane %v941, 0
        %v1115 = vadd.f32 %v1096, %v1113
        %v1116 = vadd.f32 %v1097, %v1113
        %v1117 = vadd.f32 %v1098, %v1113
        %v1118 = vadd.f32 %v1099, %v1113
        %v1119 = vadd.f32 %v1100, %v1113
        %v1120 = vadd.f32 %v1101, %v1113
        %v1121 = vadd.f32 %v1102, %v1113
        %v1122 = vadd.f32 %v1103, %v1113
        %v1123 = vadd.f32 %v1104, %v1113
        %v1124 = vadd.f32 %v1105, %v1113
        %v1125 = vadd.f32 %v1106, %v1113
        %v1126 = vadd.f32 %v1107, %v1113
        %v1127 = vadd.f32 %v1108, %v1113
        %v1128 = vadd.f32 %v1109, %v1113
        %v1129 = vadd.f32 %v1110, %v1113
        %v1130 = vadd.f32 %v1111, %v1113
        %v1131 = vmax.f32 %v1115, 0.0
        %v1132 = vmax.f32 %v1116, 0.0
        %v1133 = vmax.f32 %v1117, 0.0
        %v1134 = vmax.f32 %v1118, 0.0
        %v1135 = vmax.f32 %v1119, 0.0
        %v1136 = vmax.f32 %v1120, 0.0
        %v1137 = vmax.f32 %v1121, 0.0
        %v1138 = vmax.f32 %v1122, 0.0
        %v1139 = vmax.f32 %v1123, 0.0
        %v1140 = vmax.f32 %v1124, 0.0
        %v1141 = vmax.f32 %v1125, 0.0
        %v1142 = vmax.f32 %v1126, 0.0
        %v1143 = vmax.f32 %v1127, 0.0
        %v1144 = vmax.f32 %v1128, 0.0
        %v1145 = vmax.f32 %v1129, 0.0
        %v1146 = vmax.f32 %v1130, 0.0
        %v1147 = vld [vmem:[#allocation2] sm:$0xff]
        %v1148 = vld [vmem:[#allocation2 + $0x8] sm:$0xff]
        %v1149 = vld [vmem:[#allocation2 + $0x10] sm:$0xff]
        %v1150 = vld [vmem:[#allocation2 + $0x18] sm:$0xff]
        %v1151 = vld [vmem:[#allocation2 + $0x20] sm:$0xff]
        %v1152 = vld [vmem:[#allocation2 + $0x28] sm:$0xff]
        %v1153 = vld [vmem:[#allocation2 + $0x30] sm:$0xff]
        %v1154 = vld [vmem:[#allocation2 + $0x38] sm:$0xff]
        %v1155 = vld [vmem:[%s4] sm:$0x1]
        %v1157 = vperm.slane %v1155, 0
        %v1160 = vsel %vm942, %v1131, 0
        %v1163 = vsel %vm942, %v1132, 0
        %v1166 = vsel %vm942, %v1133, 0
        %v1169 = vsel %vm942, %v1134, 0
        %v1172 = vsel %vm942, %v1135, 0
        %v1175 = vsel %vm942, %v1136, 0
        %v1178 = vsel %vm942, %v1137, 0
        %v1181 = vsel %vm942, %v1138, 0
        %v1184 = vsel %vm942, %v1139, 0
        %v1187 = vsel %vm942, %v1140, 0
        %v1190 = vsel %vm942, %v1141, 0
        %v1193 = vsel %vm942, %v1142, 0
        %v1196 = vsel %vm942, %v1143, 0
        %v1199 = vsel %vm942, %v1144, 0
        %v1202 = vsel %vm942, %v1145, 0
        %v1205 = vsel %vm942, %v1146, 0
        %1207 = vmatpush.msra.mxu0 0.0
        %1208 = vmatpush.msra.mxu0 0.0
        %1209 = vmatpush.msra.mxu0 0.0
        %1210 = vmatpush.msra.mxu0 0.0
        %1211 = vmatpush.msra.mxu0 0.0
        %1212 = vmatpush.msra.mxu0 0.0
        %1213 = vmatpush.msra.mxu0 0.0
        %1214 = vmatpush.msra.mxu0 0.0
        %1215 = vmatpush.msra.mxu0 %v1154
        %1216 = vmatpush.msra.mxu0 %v1153
        %1217 = vmatpush.msra.mxu0 %v1152
        %1218 = vmatpush.msra.mxu0 %v1151
        %1219 = vmatpush.msra.mxu0 %v1150
        %1220 = vmatpush.msra.mxu0 %v1149
        %1221 = vmatpush.msra.mxu0 %v1148
        %1222 = vmatpush.msra.mxu0 %v1147
        %1223 = vmatmul.f32.gmra.mxu0 %v1160
        %v1224 = vpop.f32.mrf.mxu0
        %v1225 = vadd.f32 %v1157, %v1224
        %1226 = vmatmul.f32.gmra.mxu0 %v1163
        %v1227 = vpop.f32.mrf.mxu0
        %v1228 = vadd.f32 %v1157, %v1227
        %1229 = vmatmul.f32.gmra.mxu0 %v1166
        %v1230 = vpop.f32.mrf.mxu0
        %v1231 = vadd.f32 %v1157, %v1230
        %1232 = vmatmul.f32.gmra.mxu0 %v1169
        %v1233 = vpop.f32.mrf.mxu0
        %v1234 = vadd.f32 %v1157, %v1233
        %1235 = vmatmul.f32.gmra.mxu0 %v1172
        %v1236 = vpop.f32.mrf.mxu0
        %v1237 = vadd.f32 %v1157, %v1236
        %1238 = vmatmul.f32.gmra.mxu0 %v1175
        %v1239 = vpop.f32.mrf.mxu0
        %v1240 = vadd.f32 %v1157, %v1239
        %1241 = vmatmul.f32.gmra.mxu0 %v1178
        %v1242 = vpop.f32.mrf.mxu0
        %v1243 = vadd.f32 %v1157, %v1242
        %1244 = vmatmul.f32.gmra.mxu0 %v1181
        %v1245 = vpop.f32.mrf.mxu0
        %v1246 = vadd.f32 %v1157, %v1245
        %1247 = vmatmul.f32.gmra.mxu0 %v1184
        %v1248 = vpop.f32.mrf.mxu0
        %v1249 = vadd.f32 %v1157, %v1248
        %1250 = vmatmul.f32.gmra.mxu0 %v1187
        %v1251 = vpop.f32.mrf.mxu0
        %v1252 = vadd.f32 %v1157, %v1251
        %1253 = vmatmul.f32.gmra.mxu0 %v1190
        %v1254 = vpop.f32.mrf.mxu0
        %v1255 = vadd.f32 %v1157, %v1254
        %1256 = vmatmul.f32.gmra.mxu0 %v1193
        %v1257 = vpop.f32.mrf.mxu0
        %v1258 = vadd.f32 %v1157, %v1257
        %1259 = vmatmul.f32.gmra.mxu0 %v1196
        %v1260 = vpop.f32.mrf.mxu0
        %v1261 = vadd.f32 %v1157, %v1260
        %1262 = vmatmul.f32.gmra.mxu0 %v1199
        %v1263 = vpop.f32.mrf.mxu0
        %v1264 = vadd.f32 %v1157, %v1263
        %1265 = vmatmul.f32.gmra.mxu0 %v1202
        %v1266 = vpop.f32.mrf.mxu0
        %v1267 = vadd.f32 %v1157, %v1266
        %1268 = vmatmul.f32.gmra.mxu0 %v1205
        %v1269 = vpop.f32.mrf.mxu0
        %v1270 = vadd.f32 %v1157, %v1269
        %1271 = vdwg.mxu0
        %v1272 = vsel %vm942, %v1225, 0.0
        %v1273 = vsel %vm942, %v1228, 0.0
        %v1274 = vadd.f32 %v1272, %v1273
        %v1275 = vsel %vm942, %v1231, 0.0
        %v1276 = vadd.f32 %v1274, %v1275
        %v1277 = vsel %vm942, %v1234, 0.0
        %v1278 = vadd.f32 %v1276, %v1277
        %v1279 = vsel %vm942, %v1237, 0.0
        %v1280 = vadd.f32 %v1278, %v1279
        %v1281 = vsel %vm942, %v1240, 0.0
        %v1282 = vadd.f32 %v1280, %v1281
        %v1283 = vsel %vm942, %v1243, 0.0
        %v1284 = vadd.f32 %v1282, %v1283
        %v1285 = vsel %vm942, %v1246, 0.0
        %v1286 = vadd.f32 %v1284, %v1285
        %v1287 = vsel %vm942, %v1249, 0.0
        %v1288 = vadd.f32 %v1286, %v1287
        %v1289 = vsel %vm942, %v1252, 0.0
        %v1290 = vadd.f32 %v1288, %v1289
        %v1291 = vsel %vm942, %v1255, 0.0
        %v1292 = vadd.f32 %v1290, %v1291
        %v1293 = vsel %vm942, %v1258, 0.0
        %v1294 = vadd.f32 %v1292, %v1293
        %v1295 = vsel %vm942, %v1261, 0.0
        %v1296 = vadd.f32 %v1294, %v1295
        %v1297 = vsel %vm942, %v1264, 0.0
        %v1298 = vadd.f32 %v1296, %v1297
        %v1299 = vsel %vm942, %v1267, 0.0
        %v1300 = vadd.f32 %v1298, %v1299
        %v1301 = vsel %vm942, %v1270, 0.0
        %v1302 = vadd.f32 %v1300, %v1301
        %1303 = vadd.xlane.f32.xlu0 %v1302
        %v1304 = vpop.xlane.xlu0 %1303
        %v1305 = vrot.slane %v1304, 4
        %v1306 = vadd.f32 %v1304, %v1305
        %v1307 = vrot.slane %v1306, 2
        %v1308 = vadd.f32 %v1306, %v1307
        %v1309 = vrot.slane %v1308, 1
        %v1310 = vadd.f32 %v1308, %v1309
        %s1311 = vtos %v1310
        %v1312 = vstv %s1311
        %v1313 = vmul.f32 %v1312, %v990
        %v1314 = vsub.f32 %v1225, %v1313
        %v1315 = vsub.f32 %v1228, %v1313
        %v1316 = vsub.f32 %v1231, %v1313
        %v1317 = vsub.f32 %v1234, %v1313
        %v1318 = vsub.f32 %v1237, %v1313
        %v1319 = vsub.f32 %v1240, %v1313
        %v1320 = vsub.f32 %v1243, %v1313
        %v1321 = vsub.f32 %v1246, %v1313
        %v1322 = vsub.f32 %v1249, %v1313
        %v1323 = vsub.f32 %v1252, %v1313
        %v1324 = vsub.f32 %v1255, %v1313
        %v1325 = vsub.f32 %v1258, %v1313
        %v1326 = vsub.f32 %v1261, %v1313
        %v1327 = vsub.f32 %v1264, %v1313
        %v1328 = vsub.f32 %v1267, %v1313
        %v1329 = vsub.f32 %v1270, %v1313
        %v1330 = vmul.f32 %v1314, %v1314
        %v1331 = vmul.f32 %v1315, %v1315
        %v1332 = vmul.f32 %v1316, %v1316
        %v1333 = vmul.f32 %v1317, %v1317
        %v1334 = vmul.f32 %v1318, %v1318
        %v1335 = vmul.f32 %v1319, %v1319
        %v1336 = vmul.f32 %v1320, %v1320
        %v1337 = vmul.f32 %v1321, %v1321
        %v1338 = vmul.f32 %v1322, %v1322
        %v1339 = vmul.f32 %v1323, %v1323
        %v1340 = vmul.f32 %v1324, %v1324
        %v1341 = vmul.f32 %v1325, %v1325
        %v1342 = vmul.f32 %v1326, %v1326
        %v1343 = vmul.f32 %v1327, %v1327
        %v1344 = vmul.f32 %v1328, %v1328
        %v1345 = vmul.f32 %v1329, %v1329
        %v1346 = vsel %vm942, %v1330, 0.0
        %v1347 = vsel %vm942, %v1331, 0.0
        %v1348 = vadd.f32 %v1346, %v1347
        %v1349 = vsel %vm942, %v1332, 0.0
        %v1350 = vadd.f32 %v1348, %v1349
        %v1351 = vsel %vm942, %v1333, 0.0
        %v1352 = vadd.f32 %v1350, %v1351
        %v1353 = vsel %vm942, %v1334, 0.0
        %v1354 = vadd.f32 %v1352, %v1353
        %v1355 = vsel %vm942, %v1335, 0.0
        %v1356 = vadd.f32 %v1354, %v1355
        %v1357 = vsel %vm942, %v1336, 0.0
        %v1358 = vadd.f32 %v1356, %v1357
        %v1359 = vsel %vm942, %v1337, 0.0
        %v1360 = vadd.f32 %v1358, %v1359
        %v1361 = vsel %vm942, %v1338, 0.0
        %v1362 = vadd.f32 %v1360, %v1361
        %v1363 = vsel %vm942, %v1339, 0.0
        %v1364 = vadd.f32 %v1362, %v1363
        %v1365 = vsel %vm942, %v1340, 0.0
        %v1366 = vadd.f32 %v1364, %v1365
        %v1367 = vsel %vm942, %v1341, 0.0
        %v1368 = vadd.f32 %v1366, %v1367
        %v1369 = vsel %vm942, %v1342, 0.0
        %v1370 = vadd.f32 %v1368, %v1369
        %v1371 = vsel %vm942, %v1343, 0.0
        %v1372 = vadd.f32 %v1370, %v1371
        %v1373 = vsel %vm942, %v1344, 0.0
        %v1374 = vadd.f32 %v1372, %v1373
        %v1375 = vsel %vm942, %v1345, 0.0
        %v1376 = vadd.f32 %v1374, %v1375
        %1377 = vadd.xlane.f32.xlu0 %v1376
        %v1378 = vpop.xlane.xlu0 %1377
        %v1379 = vrot.slane %v1378, 4
        %v1380 = vadd.f32 %v1378, %v1379
        %v1381 = vrot.slane %v1380, 2
        %v1382 = vadd.f32 %v1380, %v1381
        %v1383 = vrot.slane %v1382, 1
        %v1384 = vadd.f32 %v1382, %v1383
        %s1385 = vtos %v1384
        %v1386 = vstv %s1385
        %v1387 = vmul.f32 %v1386, %v990
        %v1388 = vadd.f32 %v1387, 1e-05
        %v1389 = vrsqrt.pop %v1388
        %v1390 = vmul.f32 %v1389, %v1388
        %v1391 = vmul.f32 %v1390, %v1389
        %v1392 = vmul.f32 0.5, %v1391
        %v1393 = vsub.f32 1.5, %v1392
        %v1394 = vmul.f32 %v1389, %v1393
        %vm1395 = vweird.f32 %v1388
        %vm1396 = vweird.f32 %v1389
        %vm1397 = vmor %vm1395, %vm1396
        %v1398 = vsel %vm1397, %v1389, %v1394
        %v1399 = vmul.f32 %v1314, %v1398
        %v1400 = vmul.f32 %v1315, %v1398
        %v1401 = vmul.f32 %v1316, %v1398
        %v1402 = vmul.f32 %v1317, %v1398
        %v1403 = vmul.f32 %v1318, %v1398
        %v1404 = vmul.f32 %v1319, %v1398
        %v1405 = vmul.f32 %v1320, %v1398
        %v1406 = vmul.f32 %v1321, %v1398
        %v1407 = vmul.f32 %v1322, %v1398
        %v1408 = vmul.f32 %v1323, %v1398
        %v1409 = vmul.f32 %v1324, %v1398
        %v1410 = vmul.f32 %v1325, %v1398
        %v1411 = vmul.f32 %v1326, %v1398
        %v1412 = vmul.f32 %v1327, %v1398
        %v1413 = vmul.f32 %v1328, %v1398
        %v1414 = vmul.f32 %v1329, %v1398
        %v1415 = vmul.f32 %v1399, %v1094
        %v1416 = vmul.f32 %v1400, %v1094
        %v1417 = vmul.f32 %v1401, %v1094
        %v1418 = vmul.f32 %v1402, %v1094
        %v1419 = vmul.f32 %v1403, %v1094
        %v1420 = vmul.f32 %v1404, %v1094
        %v1421 = vmul.f32 %v1405, %v1094
        %v1422 = vmul.f32 %v1406, %v1094
        %v1423 = vmul.f32 %v1407, %v1094
        %v1424 = vmul.f32 %v1408, %v1094
        %v1425 = vmul.f32 %v1409, %v1094
        %v1426 = vmul.f32 %v1410, %v1094
        %v1427 = vmul.f32 %v1411, %v1094
        %v1428 = vmul.f32 %v1412, %v1094
        %v1429 = vmul.f32 %v1413, %v1094
        %v1430 = vmul.f32 %v1414, %v1094
        %v1431 = vadd.f32 %v1415, %v1113
        %v1432 = vadd.f32 %v1416, %v1113
        %v1433 = vadd.f32 %v1417, %v1113
        %v1434 = vadd.f32 %v1418, %v1113
        %v1435 = vadd.f32 %v1419, %v1113
        %v1436 = vadd.f32 %v1420, %v1113
        %v1437 = vadd.f32 %v1421, %v1113
        %v1438 = vadd.f32 %v1422, %v1113
        %v1439 = vadd.f32 %v1423, %v1113
        %v1440 = vadd.f32 %v1424, %v1113
        %v1441 = vadd.f32 %v1425, %v1113
        %v1442 = vadd.f32 %v1426, %v1113
        %v1443 = vadd.f32 %v1427, %v1113
        %v1444 = vadd.f32 %v1428, %v1113
        %v1445 = vadd.f32 %v1429, %v1113
        %v1446 = vadd.f32 %v1430, %v1113
        %v1447 = vmax.f32 %v1431, 0.0
        %v1448 = vmax.f32 %v1432, 0.0
        %v1449 = vmax.f32 %v1433, 0.0
        %v1450 = vmax.f32 %v1434, 0.0
        %v1451 = vmax.f32 %v1435, 0.0
        %v1452 = vmax.f32 %v1436, 0.0
        %v1453 = vmax.f32 %v1437, 0.0
        %v1454 = vmax.f32 %v1438, 0.0
        %v1455 = vmax.f32 %v1439, 0.0
        %v1456 = vmax.f32 %v1440, 0.0
        %v1457 = vmax.f32 %v1441, 0.0
        %v1458 = vmax.f32 %v1442, 0.0
        %v1459 = vmax.f32 %v1443, 0.0
        %v1460 = vmax.f32 %v1444, 0.0
        %v1461 = vmax.f32 %v1445, 0.0
        %v1462 = vmax.f32 %v1446, 0.0
        %v1463 = vld [vmem:[#allocation5] sm:$0xff]
        %v1464 = vld [vmem:[#allocation5 + $0x8] sm:$0xff]
        %v1465 = vld [vmem:[#allocation5 + $0x10] sm:$0xff]
        %v1466 = vld [vmem:[#allocation5 + $0x18] sm:$0xff]
        %v1467 = vld [vmem:[#allocation5 + $0x20] sm:$0xff]
        %v1468 = vld [vmem:[#allocation5 + $0x28] sm:$0xff]
        %v1469 = vld [vmem:[#allocation5 + $0x30] sm:$0xff]
        %v1470 = vld [vmem:[#allocation5 + $0x38] sm:$0xff]
        %v1471 = vld [vmem:[%s6] sm:$0x1]
        %v1473 = vperm.slane %v1471, 0
        %v1476 = vsel %vm942, %v1447, 0
        %v1479 = vsel %vm942, %v1448, 0
        %v1482 = vsel %vm942, %v1449, 0
        %v1485 = vsel %vm942, %v1450, 0
        %v1488 = vsel %vm942, %v1451, 0
        %v1491 = vsel %vm942, %v1452, 0
        %v1494 = vsel %vm942, %v1453, 0
        %v1497 = vsel %vm942, %v1454, 0
        %v1500 = vsel %vm942, %v1455, 0
        %v1503 = vsel %vm942, %v1456, 0
        %v1506 = vsel %vm942, %v1457, 0
        %v1509 = vsel %vm942, %v1458, 0
        %v1512 = vsel %vm942, %v1459, 0
        %v1515 = vsel %vm942, %v1460, 0
        %v1518 = vsel %vm942, %v1461, 0
        %v1521 = vsel %vm942, %v1462, 0
        %1523 = vmatpush.msra.mxu0 0.0
        %1524 = vmatpush.msra.mxu0 0.0
        %1525 = vmatpush.msra.mxu0 0.0
        %1526 = vmatpush.msra.mxu0 0.0
        %1527 = vmatpush.msra.mxu0 0.0
        %1528 = vmatpush.msra.mxu0 0.0
        %1529 = vmatpush.msra.mxu0 0.0
        %1530 = vmatpush.msra.mxu0 0.0
        %1531 = vmatpush.msra.mxu0 %v1470
        %1532 = vmatpush.msra.mxu0 %v1469
        %1533 = vmatpush.msra.mxu0 %v1468
        %1534 = vmatpush.msra.mxu0 %v1467
        %1535 = vmatpush.msra.mxu0 %v1466
        %1536 = vmatpush.msra.mxu0 %v1465
        %1537 = vmatpush.msra.mxu0 %v1464
        %1538 = vmatpush.msra.mxu0 %v1463
        %1539 = vmatmul.f32.gmra.mxu0 %v1476
        %v1540 = vpop.f32.mrf.mxu0
        %v1541 = vadd.f32 %v1473, %v1540
        %1542 = vmatmul.f32.gmra.mxu0 %v1479
        %v1543 = vpop.f32.mrf.mxu0
        %v1544 = vadd.f32 %v1473, %v1543
        %1545 = vmatmul.f32.gmra.mxu0 %v1482
        %v1546 = vpop.f32.mrf.mxu0
        %v1547 = vadd.f32 %v1473, %v1546
        %1548 = vmatmul.f32.gmra.mxu0 %v1485
        %v1549 = vpop.f32.mrf.mxu0
        %v1550 = vadd.f32 %v1473, %v1549
        %1551 = vmatmul.f32.gmra.mxu0 %v1488
        %v1552 = vpop.f32.mrf.mxu0
        %v1553 = vadd.f32 %v1473, %v1552
        %1554 = vmatmul.f32.gmra.mxu0 %v1491
        %v1555 = vpop.f32.mrf.mxu0
        %v1556 = vadd.f32 %v1473, %v1555
        %1557 = vmatmul.f32.gmra.mxu0 %v1494
        %v1558 = vpop.f32.mrf.mxu0
        %v1559 = vadd.f32 %v1473, %v1558
        %1560 = vmatmul.f32.gmra.mxu0 %v1497
        %v1561 = vpop.f32.mrf.mxu0
        %v1562 = vadd.f32 %v1473, %v1561
        %1563 = vmatmul.f32.gmra.mxu0 %v1500
        %v1564 = vpop.f32.mrf.mxu0
        %v1565 = vadd.f32 %v1473, %v1564
        %1566 = vmatmul.f32.gmra.mxu0 %v1503
        %v1567 = vpop.f32.mrf.mxu0
        %v1568 = vadd.f32 %v1473, %v1567
        %1569 = vmatmul.f32.gmra.mxu0 %v1506
        %v1570 = vpop.f32.mrf.mxu0
        %v1571 = vadd.f32 %v1473, %v1570
        %1572 = vmatmul.f32.gmra.mxu0 %v1509
        %v1573 = vpop.f32.mrf.mxu0
        %v1574 = vadd.f32 %v1473, %v1573
        %1575 = vmatmul.f32.gmra.mxu0 %v1512
        %v1576 = vpop.f32.mrf.mxu0
        %v1577 = vadd.f32 %v1473, %v1576
        %1578 = vmatmul.f32.gmra.mxu0 %v1515
        %v1579 = vpop.f32.mrf.mxu0
        %v1580 = vadd.f32 %v1473, %v1579
        %1581 = vmatmul.f32.gmra.mxu0 %v1518
        %v1582 = vpop.f32.mrf.mxu0
        %v1583 = vadd.f32 %v1473, %v1582
        %1584 = vmatmul.f32.gmra.mxu0 %v1521
        %v1585 = vpop.f32.mrf.mxu0
        %v1586 = vadd.f32 %v1473, %v1585
        %1587 = vdwg.mxu0
        %v1588 = vsel %vm942, %v1541, 0.0
        %v1589 = vsel %vm942, %v1544, 0.0
        %v1590 = vadd.f32 %v1588, %v1589
        %v1591 = vsel %vm942, %v1547, 0.0
        %v1592 = vadd.f32 %v1590, %v1591
        %v1593 = vsel %vm942, %v1550, 0.0
        %v1594 = vadd.f32 %v1592, %v1593
        %v1595 = vsel %vm942, %v1553, 0.0
        %v1596 = vadd.f32 %v1594, %v1595
        %v1597 = vsel %vm942, %v1556, 0.0
        %v1598 = vadd.f32 %v1596, %v1597
        %v1599 = vsel %vm942, %v1559, 0.0
        %v1600 = vadd.f32 %v1598, %v1599
        %v1601 = vsel %vm942, %v1562, 0.0
        %v1602 = vadd.f32 %v1600, %v1601
        %v1603 = vsel %vm942, %v1565, 0.0
        %v1604 = vadd.f32 %v1602, %v1603
        %v1605 = vsel %vm942, %v1568, 0.0
        %v1606 = vadd.f32 %v1604, %v1605
        %v1607 = vsel %vm942, %v1571, 0.0
        %v1608 = vadd.f32 %v1606, %v1607
        %v1609 = vsel %vm942, %v1574, 0.0
        %v1610 = vadd.f32 %v1608, %v1609
        %v1611 = vsel %vm942, %v1577, 0.0
        %v1612 = vadd.f32 %v1610, %v1611
        %v1613 = vsel %vm942, %v1580, 0.0
        %v1614 = vadd.f32 %v1612, %v1613
        %v1615 = vsel %vm942, %v1583, 0.0
        %v1616 = vadd.f32 %v1614, %v1615
        %v1617 = vsel %vm942, %v1586, 0.0
        %v1618 = vadd.f32 %v1616, %v1617
        %1619 = vadd.xlane.f32.xlu0 %v1618
        %v1620 = vpop.xlane.xlu0 %1619
        %v1621 = vrot.slane %v1620, 4
        %v1622 = vadd.f32 %v1620, %v1621
        %v1623 = vrot.slane %v1622, 2
        %v1624 = vadd.f32 %v1622, %v1623
        %v1625 = vrot.slane %v1624, 1
        %v1626 = vadd.f32 %v1624, %v1625
        %s1627 = vtos %v1626
        %v1628 = vstv %s1627
        %v1629 = vmul.f32 %v1628, %v990
        %v1630 = vsub.f32 %v1541, %v1629
        %v1631 = vsub.f32 %v1544, %v1629
        %v1632 = vsub.f32 %v1547, %v1629
        %v1633 = vsub.f32 %v1550, %v1629
        %v1634 = vsub.f32 %v1553, %v1629
        %v1635 = vsub.f32 %v1556, %v1629
        %v1636 = vsub.f32 %v1559, %v1629
        %v1637 = vsub.f32 %v1562, %v1629
        %v1638 = vsub.f32 %v1565, %v1629
        %v1639 = vsub.f32 %v1568, %v1629
        %v1640 = vsub.f32 %v1571, %v1629
        %v1641 = vsub.f32 %v1574, %v1629
        %v1642 = vsub.f32 %v1577, %v1629
        %v1643 = vsub.f32 %v1580, %v1629
        %v1644 = vsub.f32 %v1583, %v1629
        %v1645 = vsub.f32 %v1586, %v1629
        %v1646 = vmul.f32 %v1630, %v1630
        %v1647 = vmul.f32 %v1631, %v1631
        %v1648 = vmul.f32 %v1632, %v1632
        %v1649 = vmul.f32 %v1633, %v1633
        %v1650 = vmul.f32 %v1634, %v1634
        %v1651 = vmul.f32 %v1635, %v1635
        %v1652 = vmul.f32 %v1636, %v1636
        %v1653 = vmul.f32 %v1637, %v1637
        %v1654 = vmul.f32 %v1638, %v1638
        %v1655 = vmul.f32 %v1639, %v1639
        %v1656 = vmul.f32 %v1640, %v1640
        %v1657 = vmul.f32 %v1641, %v1641
        %v1658 = vmul.f32 %v1642, %v1642
        %v1659 = vmul.f32 %v1643, %v1643
        %v1660 = vmul.f32 %v1644, %v1644
        %v1661 = vmul.f32 %v1645, %v1645
        %v1662 = vsel %vm942, %v1646, 0.0
        %v1663 = vsel %vm942, %v1647, 0.0
        %v1664 = vadd.f32 %v1662, %v1663
        %v1665 = vsel %vm942, %v1648, 0.0
        %v1666 = vadd.f32 %v1664, %v1665
        %v1667 = vsel %vm942, %v1649, 0.0
        %v1668 = vadd.f32 %v1666, %v1667
        %v1669 = vsel %vm942, %v1650, 0.0
        %v1670 = vadd.f32 %v1668, %v1669
        %v1671 = vsel %vm942, %v1651, 0.0
        %v1672 = vadd.f32 %v1670, %v1671
        %v1673 = vsel %vm942, %v1652, 0.0
        %v1674 = vadd.f32 %v1672, %v1673
        %v1675 = vsel %vm942, %v1653, 0.0
        %v1676 = vadd.f32 %v1674, %v1675
        %v1677 = vsel %vm942, %v1654, 0.0
        %v1678 = vadd.f32 %v1676, %v1677
        %v1679 = vsel %vm942, %v1655, 0.0
        %v1680 = vadd.f32 %v1678, %v1679
        %v1681 = vsel %vm942, %v1656, 0.0
        %v1682 = vadd.f32 %v1680, %v1681
        %v1683 = vsel %vm942, %v1657, 0.0
        %v1684 = vadd.f32 %v1682, %v1683
        %v1685 = vsel %vm942, %v1658, 0.0
        %v1686 = vadd.f32 %v1684, %v1685
        %v1687 = vsel %vm942, %v1659, 0.0
        %v1688 = vadd.f32 %v1686, %v1687
        %v1689 = vsel %vm942, %v1660, 0.0
        %v1690 = vadd.f32 %v1688, %v1689
        %v1691 = vsel %vm942, %v1661, 0.0
        %v1692 = vadd.f32 %v1690, %v1691
        %1693 = vadd.xlane.f32.xlu0 %v1692
        %v1694 = vpop.xlane.xlu0 %1693
        %v1695 = vrot.slane %v1694, 4
        %v1696 = vadd.f32 %v1694, %v1695
        %v1697 = vrot.slane %v1696, 2
        %v1698 = vadd.f32 %v1696, %v1697
        %v1699 = vrot.slane %v1698, 1
        %v1700 = vadd.f32 %v1698, %v1699
        %s1701 = vtos %v1700
        %v1702 = vstv %s1701
        %v1703 = vmul.f32 %v1702, %v990
        %v1704 = vadd.f32 %v1703, 1e-05
        %v1705 = vrsqrt.pop %v1704
        %v1706 = vmul.f32 %v1705, %v1704
        %v1707 = vmul.f32 %v1706, %v1705
        %v1708 = vmul.f32 0.5, %v1707
        %v1709 = vsub.f32 1.5, %v1708
        %v1710 = vmul.f32 %v1705, %v1709
        %vm1711 = vweird.f32 %v1704
        %vm1712 = vweird.f32 %v1705
        %vm1713 = vmor %vm1711, %vm1712
        %v1714 = vsel %vm1713, %v1705, %v1710
        %v1715 = vmul.f32 %v1630, %v1714
        %v1716 = vmul.f32 %v1631, %v1714
        %v1717 = vmul.f32 %v1632, %v1714
        %v1718 = vmul.f32 %v1633, %v1714
        %v1719 = vmul.f32 %v1634, %v1714
        %v1720 = vmul.f32 %v1635, %v1714
        %v1721 = vmul.f32 %v1636, %v1714
        %v1722 = vmul.f32 %v1637, %v1714
        %v1723 = vmul.f32 %v1638, %v1714
        %v1724 = vmul.f32 %v1639, %v1714
        %v1725 = vmul.f32 %v1640, %v1714
        %v1726 = vmul.f32 %v1641, %v1714
        %v1727 = vmul.f32 %v1642, %v1714
        %v1728 = vmul.f32 %v1643, %v1714
        %v1729 = vmul.f32 %v1644, %v1714
        %v1730 = vmul.f32 %v1645, %v1714
        %v1731 = vmul.f32 %v1715, %v1094
        %v1732 = vmul.f32 %v1716, %v1094
        %v1733 = vmul.f32 %v1717, %v1094
        %v1734 = vmul.f32 %v1718, %v1094
        %v1735 = vmul.f32 %v1719, %v1094
        %v1736 = vmul.f32 %v1720, %v1094
        %v1737 = vmul.f32 %v1721, %v1094
        %v1738 = vmul.f32 %v1722, %v1094
        %v1739 = vmul.f32 %v1723, %v1094
        %v1740 = vmul.f32 %v1724, %v1094
        %v1741 = vmul.f32 %v1725, %v1094
        %v1742 = vmul.f32 %v1726, %v1094
        %v1743 = vmul.f32 %v1727, %v1094
        %v1744 = vmul.f32 %v1728, %v1094
        %v1745 = vmul.f32 %v1729, %v1094
        %v1746 = vmul.f32 %v1730, %v1094
        %v1747 = vadd.f32 %v1731, %v1113
        %v1748 = vadd.f32 %v1732, %v1113
        %v1749 = vadd.f32 %v1733, %v1113
        %v1750 = vadd.f32 %v1734, %v1113
        %v1751 = vadd.f32 %v1735, %v1113
        %v1752 = vadd.f32 %v1736, %v1113
        %v1753 = vadd.f32 %v1737, %v1113
        %v1754 = vadd.f32 %v1738, %v1113
        %v1755 = vadd.f32 %v1739, %v1113
        %v1756 = vadd.f32 %v1740, %v1113
        %v1757 = vadd.f32 %v1741, %v1113
        %v1758 = vadd.f32 %v1742, %v1113
        %v1759 = vadd.f32 %v1743, %v1113
        %v1760 = vadd.f32 %v1744, %v1113
        %v1761 = vadd.f32 %v1745, %v1113
        %v1762 = vadd.f32 %v1746, %v1113
        %v1763 = vmax.f32 %v1747, 0.0
        %v1764 = vmax.f32 %v1748, 0.0
        %v1765 = vmax.f32 %v1749, 0.0
        %v1766 = vmax.f32 %v1750, 0.0
        %v1767 = vmax.f32 %v1751, 0.0
        %v1768 = vmax.f32 %v1752, 0.0
        %v1769 = vmax.f32 %v1753, 0.0
        %v1770 = vmax.f32 %v1754, 0.0
        %v1771 = vmax.f32 %v1755, 0.0
        %v1772 = vmax.f32 %v1756, 0.0
        %v1773 = vmax.f32 %v1757, 0.0
        %v1774 = vmax.f32 %v1758, 0.0
        %v1775 = vmax.f32 %v1759, 0.0
        %v1776 = vmax.f32 %v1760, 0.0
        %v1777 = vmax.f32 %v1761, 0.0
        %v1778 = vmax.f32 %v1762, 0.0
        %v1779 = vld [vmem:[#allocation7] sm:$0xff]
        %v1780 = vld [vmem:[#allocation7 + $0x8] sm:$0xff]
        %v1781 = vld [vmem:[#allocation7 + $0x10] sm:$0xff]
        %v1782 = vld [vmem:[#allocation7 + $0x18] sm:$0xff]
        %v1783 = vld [vmem:[#allocation7 + $0x20] sm:$0xff]
        %v1784 = vld [vmem:[#allocation7 + $0x28] sm:$0xff]
        %v1785 = vld [vmem:[#allocation7 + $0x30] sm:$0xff]
        %v1786 = vld [vmem:[#allocation7 + $0x38] sm:$0xff]
        %v1787 = vld [vmem:[%s8] sm:$0x1]
        %v1789 = vperm.slane %v1787, 0
        %v1792 = vsel %vm942, %v1763, 0
        %v1795 = vsel %vm942, %v1764, 0
        %v1798 = vsel %vm942, %v1765, 0
        %v1801 = vsel %vm942, %v1766, 0
        %v1804 = vsel %vm942, %v1767, 0
        %v1807 = vsel %vm942, %v1768, 0
        %v1810 = vsel %vm942, %v1769, 0
        %v1813 = vsel %vm942, %v1770, 0
        %v1816 = vsel %vm942, %v1771, 0
        %v1819 = vsel %vm942, %v1772, 0
        %v1822 = vsel %vm942, %v1773, 0
        %v1825 = vsel %vm942, %v1774, 0
        %v1828 = vsel %vm942, %v1775, 0
        %v1831 = vsel %vm942, %v1776, 0
        %v1834 = vsel %vm942, %v1777, 0
        %v1837 = vsel %vm942, %v1778, 0
        %1839 = vmatpush.msra.mxu0 0.0
        %1840 = vmatpush.msra.mxu0 0.0
        %1841 = vmatpush.msra.mxu0 0.0
        %1842 = vmatpush.msra.mxu0 0.0
        %1843 = vmatpush.msra.mxu0 0.0
        %1844 = vmatpush.msra.mxu0 0.0
        %1845 = vmatpush.msra.mxu0 0.0
        %1846 = vmatpush.msra.mxu0 0.0
        %1847 = vmatpush.msra.mxu0 %v1786
        %1848 = vmatpush.msra.mxu0 %v1785
        %1849 = vmatpush.msra.mxu0 %v1784
        %1850 = vmatpush.msra.mxu0 %v1783
        %1851 = vmatpush.msra.mxu0 %v1782
        %1852 = vmatpush.msra.mxu0 %v1781
        %1853 = vmatpush.msra.mxu0 %v1780
        %1854 = vmatpush.msra.mxu0 %v1779
        %1855 = vmatmul.f32.gmra.mxu0 %v1792
        %v1856 = vpop.f32.mrf.mxu0
        %v1857 = vadd.f32 %v1789, %v1856
        %1858 = vmatmul.f32.gmra.mxu0 %v1795
        %v1859 = vpop.f32.mrf.mxu0
        %v1860 = vadd.f32 %v1789, %v1859
        %1861 = vmatmul.f32.gmra.mxu0 %v1798
        %v1862 = vpop.f32.mrf.mxu0
        %v1863 = vadd.f32 %v1789, %v1862
        %1864 = vmatmul.f32.gmra.mxu0 %v1801
        %v1865 = vpop.f32.mrf.mxu0
        %v1866 = vadd.f32 %v1789, %v1865
        %1867 = vmatmul.f32.gmra.mxu0 %v1804
        %v1868 = vpop.f32.mrf.mxu0
        %v1869 = vadd.f32 %v1789, %v1868
        %1870 = vmatmul.f32.gmra.mxu0 %v1807
        %v1871 = vpop.f32.mrf.mxu0
        %v1872 = vadd.f32 %v1789, %v1871
        %1873 = vmatmul.f32.gmra.mxu0 %v1810
        %v1874 = vpop.f32.mrf.mxu0
        %v1875 = vadd.f32 %v1789, %v1874
        %1876 = vmatmul.f32.gmra.mxu0 %v1813
        %v1877 = vpop.f32.mrf.mxu0
        %v1878 = vadd.f32 %v1789, %v1877
        %1879 = vmatmul.f32.gmra.mxu0 %v1816
        %v1880 = vpop.f32.mrf.mxu0
        %v1881 = vadd.f32 %v1789, %v1880
        %1882 = vmatmul.f32.gmra.mxu0 %v1819
        %v1883 = vpop.f32.mrf.mxu0
        %v1884 = vadd.f32 %v1789, %v1883
        %1885 = vmatmul.f32.gmra.mxu0 %v1822
        %v1886 = vpop.f32.mrf.mxu0
        %v1887 = vadd.f32 %v1789, %v1886
        %1888 = vmatmul.f32.gmra.mxu0 %v1825
        %v1889 = vpop.f32.mrf.mxu0
        %v1890 = vadd.f32 %v1789, %v1889
        %1891 = vmatmul.f32.gmra.mxu0 %v1828
        %v1892 = vpop.f32.mrf.mxu0
        %v1893 = vadd.f32 %v1789, %v1892
        %1894 = vmatmul.f32.gmra.mxu0 %v1831
        %v1895 = vpop.f32.mrf.mxu0
        %v1896 = vadd.f32 %v1789, %v1895
        %1897 = vmatmul.f32.gmra.mxu0 %v1834
        %v1898 = vpop.f32.mrf.mxu0
        %v1899 = vadd.f32 %v1789, %v1898
        %1900 = vmatmul.f32.gmra.mxu0 %v1837
        %v1901 = vpop.f32.mrf.mxu0
        %v1902 = vadd.f32 %v1789, %v1901
        %1903 = vdwg.mxu0
        %v1904 = vld [vmem:[%s13] sm:$0x1]
        %v1905 = vld [vmem:[%s14] sm:$0x1]
        %v1906 = vadd.f32 %v1857, %v1860
        %v1907 = vadd.f32 %v1906, %v1863
        %v1908 = vadd.f32 %v1907, %v1866
        %v1909 = vadd.f32 %v1908, %v1869
        %v1910 = vadd.f32 %v1909, %v1872
        %v1911 = vadd.f32 %v1910, %v1875
        %v1912 = vadd.f32 %v1911, %v1878
        %v1913 = vadd.f32 %v1912, %v1881
        %v1914 = vadd.f32 %v1913, %v1884
        %v1915 = vadd.f32 %v1914, %v1887
        %v1916 = vadd.f32 %v1915, %v1890
        %v1917 = vadd.f32 %v1916, %v1893
        %v1918 = vadd.f32 %v1917, %v1896
        %v1919 = vadd.f32 %v1918, %v1899
        %v1920 = vadd.f32 %v1919, %v1902
        %1921 = vadd.xlane.f32.xlu0 %v1920
        %v1922 = vpop.xlane.xlu0 %1921
        %v1923 = vrot.slane %v1922, 4
        %v1924 = vadd.f32 %v1922, %v1923
        %v1925 = vrot.slane %v1924, 2
        %v1926 = vadd.f32 %v1924, %v1925
        %v1927 = vrot.slane %v1926, 1
        %v1928 = vadd.f32 %v1926, %v1927
        %s1929 = vtos %v1928
        %v1930 = vstv %s1929
        %v1931 = vrcp.pop 16384.0
        %v1932 = vmul.f32 16384.0, %v1931
        %v1933 = vsub.f32 1.0, %v1932
        %v1934 = vmul.f32 %v1931, %v1933
        %v1935 = vadd.f32 %v1931, %v1934
        %vm1936 = vweird.f32 %v1931
        %v1937 = vsel %vm1936, %v1931, %v1935
        %v1938 = vmul.f32 %v1930, %v1937
        %v1939 = vsub.f32 %v1857, %v1938
        %v1940 = vsub.f32 %v1860, %v1938
        %v1941 = vsub.f32 %v1863, %v1938
        %v1942 = vsub.f32 %v1866, %v1938
        %v1943 = vsub.f32 %v1869, %v1938
        %v1944 = vsub.f32 %v1872, %v1938
        %v1945 = vsub.f32 %v1875, %v1938
        %v1946 = vsub.f32 %v1878, %v1938
        %v1947 = vsub.f32 %v1881, %v1938
        %v1948 = vsub.f32 %v1884, %v1938
        %v1949 = vsub.f32 %v1887, %v1938
        %v1950 = vsub.f32 %v1890, %v1938
        %v1951 = vsub.f32 %v1893, %v1938
        %v1952 = vsub.f32 %v1896, %v1938
        %v1953 = vsub.f32 %v1899, %v1938
        %v1954 = vsub.f32 %v1902, %v1938
        %v1955 = vmul.f32 %v1939, %v1939
        %v1956 = vmul.f32 %v1940, %v1940
        %v1957 = vmul.f32 %v1941, %v1941
        %v1958 = vmul.f32 %v1942, %v1942
        %v1959 = vmul.f32 %v1943, %v1943
        %v1960 = vmul.f32 %v1944, %v1944
        %v1961 = vmul.f32 %v1945, %v1945
        %v1962 = vmul.f32 %v1946, %v1946
        %v1963 = vmul.f32 %v1947, %v1947
        %v1964 = vmul.f32 %v1948, %v1948
        %v1965 = vmul.f32 %v1949, %v1949
        %v1966 = vmul.f32 %v1950, %v1950
        %v1967 = vmul.f32 %v1951, %v1951
        %v1968 = vmul.f32 %v1952, %v1952
        %v1969 = vmul.f32 %v1953, %v1953
        %v1970 = vmul.f32 %v1954, %v1954
        %v1971 = vadd.f32 %v1955, %v1956
        %v1972 = vadd.f32 %v1971, %v1957
        %v1973 = vadd.f32 %v1972, %v1958
        %v1974 = vadd.f32 %v1973, %v1959
        %v1975 = vadd.f32 %v1974, %v1960
        %v1976 = vadd.f32 %v1975, %v1961
        %v1977 = vadd.f32 %v1976, %v1962
        %v1978 = vadd.f32 %v1977, %v1963
        %v1979 = vadd.f32 %v1978, %v1964
        %v1980 = vadd.f32 %v1979, %v1965
        %v1981 = vadd.f32 %v1980, %v1966
        %v1982 = vadd.f32 %v1981, %v1967
        %v1983 = vadd.f32 %v1982, %v1968
        %v1984 = vadd.f32 %v1983, %v1969
        %v1985 = vadd.f32 %v1984, %v1970
        %1986 = vadd.xlane.f32.xlu0 %v1985
        %v1987 = vpop.xlane.xlu0 %1986
        %v1988 = vrot.slane %v1987, 4
        %v1989 = vadd.f32 %v1987, %v1988
        %v1990 = vrot.slane %v1989, 2
        %v1991 = vadd.f32 %v1989, %v1990
        %v1992 = vrot.slane %v1991, 1
        %v1993 = vadd.f32 %v1991, %v1992
        %s1994 = vtos %v1993
        %v1995 = vstv %s1994
        %v1996 = vmul.f32 %v1995, %v1937
        %v1997 = vadd.f32 %v1996, 1e-05
        %v1998 = vrsqrt.pop %v1997
        %v1999 = vmul.f32 %v1998, %v1997
        %v2000 = vmul.f32 %v1999, %v1998
        %v2001 = vmul.f32 0.5, %v2000
        %v2002 = vsub.f32 1.5, %v2001
        %v2003 = vmul.f32 %v1998, %v2002
        %vm2004 = vweird.f32 %v1997
        %vm2005 = vweird.f32 %v1998
        %vm2006 = vmor %vm2004, %vm2005
        %v2007 = vsel %vm2006, %v1998, %v2003
        %v2008 = vmul.f32 %v1939, %v2007
        %v2009 = vmul.f32 %v1940, %v2007
        %v2010 = vmul.f32 %v1941, %v2007
        %v2011 = vmul.f32 %v1942, %v2007
        %v2012 = vmul.f32 %v1943, %v2007
        %v2013 = vmul.f32 %v1944, %v2007
        %v2014 = vmul.f32 %v1945, %v2007
        %v2015 = vmul.f32 %v1946, %v2007
        %v2016 = vmul.f32 %v1947, %v2007
        %v2017 = vmul.f32 %v1948, %v2007
        %v2018 = vmul.f32 %v1949, %v2007
        %v2019 = vmul.f32 %v1950, %v2007
        %v2020 = vmul.f32 %v1951, %v2007
        %v2021 = vmul.f32 %v1952, %v2007
        %v2022 = vmul.f32 %v1953, %v2007
        %v2023 = vmul.f32 %v1954, %v2007
        %v2025 = vperm.slane %v1904, 0
        %v2027 = vmul.f32 %v2008, %v2025
        %v2028 = vmul.f32 %v2009, %v2025
        %v2029 = vmul.f32 %v2010, %v2025
        %v2030 = vmul.f32 %v2011, %v2025
        %v2031 = vmul.f32 %v2012, %v2025
        %v2032 = vmul.f32 %v2013, %v2025
        %v2033 = vmul.f32 %v2014, %v2025
        %v2034 = vmul.f32 %v2015, %v2025
        %v2035 = vmul.f32 %v2016, %v2025
        %v2036 = vmul.f32 %v2017, %v2025
        %v2037 = vmul.f32 %v2018, %v2025
        %v2038 = vmul.f32 %v2019, %v2025
        %v2039 = vmul.f32 %v2020, %v2025
        %v2040 = vmul.f32 %v2021, %v2025
        %v2041 = vmul.f32 %v2022, %v2025
        %v2042 = vmul.f32 %v2023, %v2025
        %v2044 = vperm.slane %v1905, 0
        %v2046 = vadd.f32 %v2027, %v2044
        %v2047 = vadd.f32 %v2028, %v2044
        %v2048 = vadd.f32 %v2029, %v2044
        %v2049 = vadd.f32 %v2030, %v2044
        %v2050 = vadd.f32 %v2031, %v2044
        %v2051 = vadd.f32 %v2032, %v2044
        %v2052 = vadd.f32 %v2033, %v2044
        %v2053 = vadd.f32 %v2034, %v2044
        %v2054 = vadd.f32 %v2035, %v2044
        %v2055 = vadd.f32 %v2036, %v2044
        %v2056 = vadd.f32 %v2037, %v2044
        %v2057 = vadd.f32 %v2038, %v2044
        %v2058 = vadd.f32 %v2039, %v2044
        %v2059 = vadd.f32 %v2040, %v2044
        %v2060 = vadd.f32 %v2041, %v2044
        %v2061 = vadd.f32 %v2042, %v2044
        %v2062 = vmax.f32 %v2046, 0.0
        %v2063 = vmax.f32 %v2047, 0.0
        %v2064 = vmax.f32 %v2048, 0.0
        %v2065 = vmax.f32 %v2049, 0.0
        %v2066 = vmax.f32 %v2050, 0.0
        %v2067 = vmax.f32 %v2051, 0.0
        %v2068 = vmax.f32 %v2052, 0.0
        %v2069 = vmax.f32 %v2053, 0.0
        %v2070 = vmax.f32 %v2054, 0.0
        %v2071 = vmax.f32 %v2055, 0.0
        %v2072 = vmax.f32 %v2056, 0.0
        %v2073 = vmax.f32 %v2057, 0.0
        %v2074 = vmax.f32 %v2058, 0.0
        %v2075 = vmax.f32 %v2059, 0.0
        %v2076 = vmax.f32 %v2060, 0.0
        %v2077 = vmax.f32 %v2061, 0.0
        %v2078 = vld [vmem:[%s9] sm:$0xff]
        %v2079 = vld [vmem:[%s9 + $0x8] sm:$0xff]
        %v2080 = vld [vmem:[%s9 + $0x10] sm:$0xff]
        %v2081 = vld [vmem:[%s9 + $0x18] sm:$0xff]
        %v2082 = vld [vmem:[%s9 + $0x20] sm:$0xff]
        %v2083 = vld [vmem:[%s9 + $0x28] sm:$0xff]
        %v2084 = vld [vmem:[%s9 + $0x30] sm:$0xff]
        %v2085 = vld [vmem:[%s9 + $0x38] sm:$0xff]
        %v2086 = vld [vmem:[%s9 + $0x40] sm:$0xff]
        %v2087 = vld [vmem:[%s9 + $0x48] sm:$0xff]
        %v2088 = vld [vmem:[%s9 + $0x50] sm:$0xff]
        %v2089 = vld [vmem:[%s9 + $0x58] sm:$0xff]
        %v2090 = vld [vmem:[%s9 + $0x60] sm:$0xff]
        %v2091 = vld [vmem:[%s9 + $0x68] sm:$0xff]
        %v2092 = vld [vmem:[%s9 + $0x70] sm:$0xff]
        %v2093 = vld [vmem:[%s9 + $0x78] sm:$0xff]
        %v2094 = vld [vmem:[%s9 + $0x80] sm:$0xff]
        %v2095 = vld [vmem:[%s9 + $0x88] sm:$0xff]
        %v2096 = vld [vmem:[%s9 + $0x90] sm:$0xff]
        %v2097 = vld [vmem:[%s9 + $0x98] sm:$0xff]
        %v2098 = vld [vmem:[%s9 + $0xa0] sm:$0xff]
        %v2099 = vld [vmem:[%s9 + $0xa8] sm:$0xff]
        %v2100 = vld [vmem:[%s9 + $0xb0] sm:$0xff]
        %v2101 = vld [vmem:[%s9 + $0xb8] sm:$0xff]
        %v2102 = vld [vmem:[%s9 + $0xc0] sm:$0xff]
        %v2103 = vld [vmem:[%s9 + $0xc8] sm:$0xff]
        %v2104 = vld [vmem:[%s9 + $0xd0] sm:$0xff]
        %v2105 = vld [vmem:[%s9 + $0xd8] sm:$0xff]
        %v2106 = vld [vmem:[%s9 + $0xe0] sm:$0xff]
        %v2107 = vld [vmem:[%s9 + $0xe8] sm:$0xff]
        %v2108 = vld [vmem:[%s9 + $0xf0] sm:$0xff]
        %v2109 = vld [vmem:[%s9 + $0xf8] sm:$0xff]
        %v2110 = vld [vmem:[%s10] sm:$0x3]
        %v2112 = vperm.slane %v2110, 0
        %v2113 = vperm.slane %v2110, 1
        %2116 = vmatpush.msra.mxu0 %v2108
        %2117 = vmatpush.msra.mxu0 %v2106
        %2118 = vmatpush.msra.mxu0 %v2104
        %2119 = vmatpush.msra.mxu0 %v2102
        %2120 = vmatpush.msra.mxu0 %v2100
        %2121 = vmatpush.msra.mxu0 %v2098
        %2122 = vmatpush.msra.mxu0 %v2096
        %2123 = vmatpush.msra.mxu0 %v2094
        %2124 = vmatpush.msra.mxu0 %v2092
        %2125 = vmatpush.msra.mxu0 %v2090
        %2126 = vmatpush.msra.mxu0 %v2088
        %2127 = vmatpush.msra.mxu0 %v2086
        %2128 = vmatpush.msra.mxu0 %v2084
        %2129 = vmatpush.msra.mxu0 %v2082
        %2130 = vmatpush.msra.mxu0 %v2080
        %2131 = vmatpush.msra.mxu0 %v2078
        %2132 = vmatmul.f32.gmra.mxu0 %v2062
        %v2133 = vpop.f32.mrf.mxu0
        %v2134 = vadd.f32 %v2112, %v2133
        %2135 = vmatmul.f32.gmra.mxu0 %v2063
        %v2136 = vpop.f32.mrf.mxu0
        %v2137 = vadd.f32 %v2112, %v2136
        %2138 = vmatmul.f32.gmra.mxu0 %v2064
        %v2139 = vpop.f32.mrf.mxu0
        %v2140 = vadd.f32 %v2112, %v2139
        %2141 = vmatmul.f32.gmra.mxu0 %v2065
        %v2142 = vpop.f32.mrf.mxu0
        %v2143 = vadd.f32 %v2112, %v2142
        %2144 = vmatmul.f32.gmra.mxu0 %v2066
        %v2145 = vpop.f32.mrf.mxu0
        %v2146 = vadd.f32 %v2112, %v2145
        %2147 = vmatmul.f32.gmra.mxu0 %v2067
        %v2148 = vpop.f32.mrf.mxu0
        %v2149 = vadd.f32 %v2112, %v2148
        %2150 = vmatmul.f32.gmra.mxu0 %v2068
        %v2151 = vpop.f32.mrf.mxu0
        %v2152 = vadd.f32 %v2112, %v2151
        %2153 = vmatmul.f32.gmra.mxu0 %v2069
        %v2154 = vpop.f32.mrf.mxu0
        %v2155 = vadd.f32 %v2112, %v2154
        %2156 = vmatmul.f32.gmra.mxu0 %v2070
        %v2157 = vpop.f32.mrf.mxu0
        %v2158 = vadd.f32 %v2112, %v2157
        %2159 = vmatmul.f32.gmra.mxu0 %v2071
        %v2160 = vpop.f32.mrf.mxu0
        %v2161 = vadd.f32 %v2112, %v2160
        %2162 = vmatmul.f32.gmra.mxu0 %v2072
        %v2163 = vpop.f32.mrf.mxu0
        %v2164 = vadd.f32 %v2112, %v2163
        %2165 = vmatmul.f32.gmra.mxu0 %v2073
        %v2166 = vpop.f32.mrf.mxu0
        %v2167 = vadd.f32 %v2112, %v2166
        %2168 = vmatmul.f32.gmra.mxu0 %v2074
        %v2169 = vpop.f32.mrf.mxu0
        %v2170 = vadd.f32 %v2112, %v2169
        %2171 = vmatmul.f32.gmra.mxu0 %v2075
        %v2172 = vpop.f32.mrf.mxu0
        %v2173 = vadd.f32 %v2112, %v2172
        %2174 = vmatmul.f32.gmra.mxu0 %v2076
        %v2175 = vpop.f32.mrf.mxu0
        %v2176 = vadd.f32 %v2112, %v2175
        %2177 = vmatmul.f32.gmra.mxu0 %v2077
        %v2178 = vpop.f32.mrf.mxu0
        %v2179 = vadd.f32 %v2112, %v2178
        %2180 = vdwg.mxu0
        %2181 = vmatpush.msra.mxu0 %v2109
        %2182 = vmatpush.msra.mxu0 %v2107
        %2183 = vmatpush.msra.mxu0 %v2105
        %2184 = vmatpush.msra.mxu0 %v2103
        %2185 = vmatpush.msra.mxu0 %v2101
        %2186 = vmatpush.msra.mxu0 %v2099
        %2187 = vmatpush.msra.mxu0 %v2097
        %2188 = vmatpush.msra.mxu0 %v2095
        %2189 = vmatpush.msra.mxu0 %v2093
        %2190 = vmatpush.msra.mxu0 %v2091
        %2191 = vmatpush.msra.mxu0 %v2089
        %2192 = vmatpush.msra.mxu0 %v2087
        %2193 = vmatpush.msra.mxu0 %v2085
        %2194 = vmatpush.msra.mxu0 %v2083
        %2195 = vmatpush.msra.mxu0 %v2081
        %2196 = vmatpush.msra.mxu0 %v2079
        %2197 = vmatmul.f32.gmra.mxu0 %v2062
        %v2198 = vpop.f32.mrf.mxu0
        %v2199 = vadd.f32 %v2113, %v2198
        %2200 = vmatmul.f32.gmra.mxu0 %v2063
        %v2201 = vpop.f32.mrf.mxu0
        %v2202 = vadd.f32 %v2113, %v2201
        %2203 = vmatmul.f32.gmra.mxu0 %v2064
        %v2204 = vpop.f32.mrf.mxu0
        %v2205 = vadd.f32 %v2113, %v2204
        %2206 = vmatmul.f32.gmra.mxu0 %v2065
        %v2207 = vpop.f32.mrf.mxu0
        %v2208 = vadd.f32 %v2113, %v2207
        %2209 = vmatmul.f32.gmra.mxu0 %v2066
        %v2210 = vpop.f32.mrf.mxu0
        %v2211 = vadd.f32 %v2113, %v2210
        %2212 = vmatmul.f32.gmra.mxu0 %v2067
        %v2213 = vpop.f32.mrf.mxu0
        %v2214 = vadd.f32 %v2113, %v2213
        %2215 = vmatmul.f32.gmra.mxu0 %v2068
        %v2216 = vpop.f32.mrf.mxu0
        %v2217 = vadd.f32 %v2113, %v2216
        %2218 = vmatmul.f32.gmra.mxu0 %v2069
        %v2219 = vpop.f32.mrf.mxu0
        %v2220 = vadd.f32 %v2113, %v2219
        %2221 = vmatmul.f32.gmra.mxu0 %v2070
        %v2222 = vpop.f32.mrf.mxu0
        %v2223 = vadd.f32 %v2113, %v2222
        %2224 = vmatmul.f32.gmra.mxu0 %v2071
        %v2225 = vpop.f32.mrf.mxu0
        %v2226 = vadd.f32 %v2113, %v2225
        %2227 = vmatmul.f32.gmra.mxu0 %v2072
        %v2228 = vpop.f32.mrf.mxu0
        %v2229 = vadd.f32 %v2113, %v2228
        %2230 = vmatmul.f32.gmra.mxu0 %v2073
        %v2231 = vpop.f32.mrf.mxu0
        %v2232 = vadd.f32 %v2113, %v2231
        %2233 = vmatmul.f32.gmra.mxu0 %v2074
        %v2234 = vpop.f32.mrf.mxu0
        %v2235 = vadd.f32 %v2113, %v2234
        %2236 = vmatmul.f32.gmra.mxu0 %v2075
        %v2237 = vpop.f32.mrf.mxu0
        %v2238 = vadd.f32 %v2113, %v2237
        %2239 = vmatmul.f32.gmra.mxu0 %v2076
        %v2240 = vpop.f32.mrf.mxu0
        %v2241 = vadd.f32 %v2113, %v2240
        %2242 = vmatmul.f32.gmra.mxu0 %v2077
        %v2243 = vpop.f32.mrf.mxu0
        %v2244 = vadd.f32 %v2113, %v2243
        %2245 = vdwg.mxu0
        %v2246 = vld [vmem:[%s15] sm:$0x3]
        %v2247 = vld [vmem:[%s16] sm:$0x3]
        %v2248 = vadd.f32 %v2134, %v2199
        %v2249 = vadd.f32 %v2248, %v2137
        %v2250 = vadd.f32 %v2249, %v2202
        %v2251 = vadd.f32 %v2250, %v2140
        %v2252 = vadd.f32 %v2251, %v2205
        %v2253 = vadd.f32 %v2252, %v2143
        %v2254 = vadd.f32 %v2253, %v2208
        %v2255 = vadd.f32 %v2254, %v2146
        %v2256 = vadd.f32 %v2255, %v2211
        %v2257 = vadd.f32 %v2256, %v2149
        %v2258 = vadd.f32 %v2257, %v2214
        %v2259 = vadd.f32 %v2258, %v2152
        %v2260 = vadd.f32 %v2259, %v2217
        %v2261 = vadd.f32 %v2260, %v2155
        %v2262 = vadd.f32 %v2261, %v2220
        %v2263 = vadd.f32 %v2262, %v2158
        %v2264 = vadd.f32 %v2263, %v2223
        %v2265 = vadd.f32 %v2264, %v2161
        %v2266 = vadd.f32 %v2265, %v2226
        %v2267 = vadd.f32 %v2266, %v2164
        %v2268 = vadd.f32 %v2267, %v2229
        %v2269 = vadd.f32 %v2268, %v2167
        %v2270 = vadd.f32 %v2269, %v2232
        %v2271 = vadd.f32 %v2270, %v2170
        %v2272 = vadd.f32 %v2271, %v2235
        %v2273 = vadd.f32 %v2272, %v2173
        %v2274 = vadd.f32 %v2273, %v2238
        %v2275 = vadd.f32 %v2274, %v2176
        %v2276 = vadd.f32 %v2275, %v2241
        %v2277 = vadd.f32 %v2276, %v2179
        %v2278 = vadd.f32 %v2277, %v2244
        %2279 = vadd.xlane.f32.xlu0 %v2278
        %v2280 = vpop.xlane.xlu0 %2279
        %v2281 = vrot.slane %v2280, 4
        %v2282 = vadd.f32 %v2280, %v2281
        %v2283 = vrot.slane %v2282, 2
        %v2284 = vadd.f32 %v2282, %v2283
        %v2285 = vrot.slane %v2284, 1
        %v2286 = vadd.f32 %v2284, %v2285
        %s2287 = vtos %v2286
        %v2288 = vstv %s2287
        %v2289 = vrcp.pop 32768.0
        %v2290 = vmul.f32 32768.0, %v2289
        %v2291 = vsub.f32 1.0, %v2290
        %v2292 = vmul.f32 %v2289, %v2291
        %v2293 = vadd.f32 %v2289, %v2292
        %vm2294 = vweird.f32 %v2289
        %v2295 = vsel %vm2294, %v2289, %v2293
        %v2296 = vmul.f32 %v2288, %v2295
        %v2297 = vsub.f32 %v2134, %v2296
        %v2298 = vsub.f32 %v2199, %v2296
        %v2299 = vsub.f32 %v2137, %v2296
        %v2300 = vsub.f32 %v2202, %v2296
        %v2301 = vsub.f32 %v2140, %v2296
        %v2302 = vsub.f32 %v2205, %v2296
        %v2303 = vsub.f32 %v2143, %v2296
        %v2304 = vsub.f32 %v2208, %v2296
        %v2305 = vsub.f32 %v2146, %v2296
        %v2306 = vsub.f32 %v2211, %v2296
        %v2307 = vsub.f32 %v2149, %v2296
        %v2308 = vsub.f32 %v2214, %v2296
        %v2309 = vsub.f32 %v2152, %v2296
        %v2310 = vsub.f32 %v2217, %v2296
        %v2311 = vsub.f32 %v2155, %v2296
        %v2312 = vsub.f32 %v2220, %v2296
        %v2313 = vsub.f32 %v2158, %v2296
        %v2314 = vsub.f32 %v2223, %v2296
        %v2315 = vsub.f32 %v2161, %v2296
        %v2316 = vsub.f32 %v2226, %v2296
        %v2317 = vsub.f32 %v2164, %v2296
        %v2318 = vsub.f32 %v2229, %v2296
        %v2319 = vsub.f32 %v2167, %v2296
        %v2320 = vsub.f32 %v2232, %v2296
        %v2321 = vsub.f32 %v2170, %v2296
        %v2322 = vsub.f32 %v2235, %v2296
        %v2323 = vsub.f32 %v2173, %v2296
        %v2324 = vsub.f32 %v2238, %v2296
        %v2325 = vsub.f32 %v2176, %v2296
        %v2326 = vsub.f32 %v2241, %v2296
        %v2327 = vsub.f32 %v2179, %v2296
        %v2328 = vsub.f32 %v2244, %v2296
        %v2329 = vmul.f32 %v2297, %v2297
        %v2330 = vmul.f32 %v2298, %v2298
        %v2331 = vmul.f32 %v2299, %v2299
        %v2332 = vmul.f32 %v2300, %v2300
        %v2333 = vmul.f32 %v2301, %v2301
        %v2334 = vmul.f32 %v2302, %v2302
        %v2335 = vmul.f32 %v2303, %v2303
        %v2336 = vmul.f32 %v2304, %v2304
        %v2337 = vmul.f32 %v2305, %v2305
        %v2338 = vmul.f32 %v2306, %v2306
        %v2339 = vmul.f32 %v2307, %v2307
        %v2340 = vmul.f32 %v2308, %v2308
        %v2341 = vmul.f32 %v2309, %v2309
        %v2342 = vmul.f32 %v2310, %v2310
        %v2343 = vmul.f32 %v2311, %v2311
        %v2344 = vmul.f32 %v2312, %v2312
        %v2345 = vmul.f32 %v2313, %v2313
        %v2346 = vmul.f32 %v2314, %v2314
        %v2347 = vmul.f32 %v2315, %v2315
        %v2348 = vmul.f32 %v2316, %v2316
        %v2349 = vmul.f32 %v2317, %v2317
        %v2350 = vmul.f32 %v2318, %v2318
        %v2351 = vmul.f32 %v2319, %v2319
        %v2352 = vmul.f32 %v2320, %v2320
        %v2353 = vmul.f32 %v2321, %v2321
        %v2354 = vmul.f32 %v2322, %v2322
        %v2355 = vmul.f32 %v2323, %v2323
        %v2356 = vmul.f32 %v2324, %v2324
        %v2357 = vmul.f32 %v2325, %v2325
        %v2358 = vmul.f32 %v2326, %v2326
        %v2359 = vmul.f32 %v2327, %v2327
        %v2360 = vmul.f32 %v2328, %v2328
        %v2361 = vadd.f32 %v2329, %v2330
        %v2362 = vadd.f32 %v2361, %v2331
        %v2363 = vadd.f32 %v2362, %v2332
        %v2364 = vadd.f32 %v2363, %v2333
        %v2365 = vadd.f32 %v2364, %v2334
        %v2366 = vadd.f32 %v2365, %v2335
        %v2367 = vadd.f32 %v2366, %v2336
        %v2368 = vadd.f32 %v2367, %v2337
        %v2369 = vadd.f32 %v2368, %v2338
        %v2370 = vadd.f32 %v2369, %v2339
        %v2371 = vadd.f32 %v2370, %v2340
        %v2372 = vadd.f32 %v2371, %v2341
        %v2373 = vadd.f32 %v2372, %v2342
        %v2374 = vadd.f32 %v2373, %v2343
        %v2375 = vadd.f32 %v2374, %v2344
        %v2376 = vadd.f32 %v2375, %v2345
        %v2377 = vadd.f32 %v2376, %v2346
        %v2378 = vadd.f32 %v2377, %v2347
        %v2379 = vadd.f32 %v2378, %v2348
        %v2380 = vadd.f32 %v2379, %v2349
        %v2381 = vadd.f32 %v2380, %v2350
        %v2382 = vadd.f32 %v2381, %v2351
        %v2383 = vadd.f32 %v2382, %v2352
        %v2384 = vadd.f32 %v2383, %v2353
        %v2385 = vadd.f32 %v2384, %v2354
        %v2386 = vadd.f32 %v2385, %v2355
        %v2387 = vadd.f32 %v2386, %v2356
        %v2388 = vadd.f32 %v2387, %v2357
        %v2389 = vadd.f32 %v2388, %v2358
        %v2390 = vadd.f32 %v2389, %v2359
        %v2391 = vadd.f32 %v2390, %v2360
        %2392 = vadd.xlane.f32.xlu0 %v2391
        %v2393 = vpop.xlane.xlu0 %2392
        %v2394 = vrot.slane %v2393, 4
        %v2395 = vadd.f32 %v2393, %v2394
        %v2396 = vrot.slane %v2395, 2
        %v2397 = vadd.f32 %v2395, %v2396
        %v2398 = vrot.slane %v2397, 1
        %v2399 = vadd.f32 %v2397, %v2398
        %s2400 = vtos %v2399
        %v2401 = vstv %s2400
        %v2402 = vmul.f32 %v2401, %v2295
        %v2403 = vadd.f32 %v2402, 1e-05
        %v2404 = vrsqrt.pop %v2403
        %v2405 = vmul.f32 %v2404, %v2403
        %v2406 = vmul.f32 %v2405, %v2404
        %v2407 = vmul.f32 0.5, %v2406
        %v2408 = vsub.f32 1.5, %v2407
        %v2409 = vmul.f32 %v2404, %v2408
        %vm2410 = vweird.f32 %v2403
        %vm2411 = vweird.f32 %v2404
        %vm2412 = vmor %vm2410, %vm2411
        %v2413 = vsel %vm2412, %v2404, %v2409
        %v2414 = vmul.f32 %v2297, %v2413
        %v2415 = vmul.f32 %v2298, %v2413
        %v2416 = vmul.f32 %v2299, %v2413
        %v2417 = vmul.f32 %v2300, %v2413
        %v2418 = vmul.f32 %v2301, %v2413
        %v2419 = vmul.f32 %v2302, %v2413
        %v2420 = vmul.f32 %v2303, %v2413
        %v2421 = vmul.f32 %v2304, %v2413
        %v2422 = vmul.f32 %v2305, %v2413
        %v2423 = vmul.f32 %v2306, %v2413
        %v2424 = vmul.f32 %v2307, %v2413
        %v2425 = vmul.f32 %v2308, %v2413
        %v2426 = vmul.f32 %v2309, %v2413
        %v2427 = vmul.f32 %v2310, %v2413
        %v2428 = vmul.f32 %v2311, %v2413
        %v2429 = vmul.f32 %v2312, %v2413
        %v2430 = vmul.f32 %v2313, %v2413
        %v2431 = vmul.f32 %v2314, %v2413
        %v2432 = vmul.f32 %v2315, %v2413
        %v2433 = vmul.f32 %v2316, %v2413
        %v2434 = vmul.f32 %v2317, %v2413
        %v2435 = vmul.f32 %v2318, %v2413
        %v2436 = vmul.f32 %v2319, %v2413
        %v2437 = vmul.f32 %v2320, %v2413
        %v2438 = vmul.f32 %v2321, %v2413
        %v2439 = vmul.f32 %v2322, %v2413
        %v2440 = vmul.f32 %v2323, %v2413
        %v2441 = vmul.f32 %v2324, %v2413
        %v2442 = vmul.f32 %v2325, %v2413
        %v2443 = vmul.f32 %v2326, %v2413
        %v2444 = vmul.f32 %v2327, %v2413
        %v2445 = vmul.f32 %v2328, %v2413
        %v2447 = vperm.slane %v2246, 0
        %v2448 = vperm.slane %v2246, 1
        %v2451 = vmul.f32 %v2414, %v2447
        %v2452 = vmul.f32 %v2415, %v2448
        %v2453 = vmul.f32 %v2416, %v2447
        %v2454 = vmul.f32 %v2417, %v2448
        %v2455 = vmul.f32 %v2418, %v2447
        %v2456 = vmul.f32 %v2419, %v2448
        %v2457 = vmul.f32 %v2420, %v2447
        %v2458 = vmul.f32 %v2421, %v2448
        %v2459 = vmul.f32 %v2422, %v2447
        %v2460 = vmul.f32 %v2423, %v2448
        %v2461 = vmul.f32 %v2424, %v2447
        %v2462 = vmul.f32 %v2425, %v2448
        %v2463 = vmul.f32 %v2426, %v2447
        %v2464 = vmul.f32 %v2427, %v2448
        %v2465 = vmul.f32 %v2428, %v2447
        %v2466 = vmul.f32 %v2429, %v2448
        %v2467 = vmul.f32 %v2430, %v2447
        %v2468 = vmul.f32 %v2431, %v2448
        %v2469 = vmul.f32 %v2432, %v2447
        %v2470 = vmul.f32 %v2433, %v2448
        %v2471 = vmul.f32 %v2434, %v2447
        %v2472 = vmul.f32 %v2435, %v2448
        %v2473 = vmul.f32 %v2436, %v2447
        %v2474 = vmul.f32 %v2437, %v2448
        %v2475 = vmul.f32 %v2438, %v2447
        %v2476 = vmul.f32 %v2439, %v2448
        %v2477 = vmul.f32 %v2440, %v2447
        %v2478 = vmul.f32 %v2441, %v2448
        %v2479 = vmul.f32 %v2442, %v2447
        %v2480 = vmul.f32 %v2443, %v2448
        %v2481 = vmul.f32 %v2444, %v2447
        %v2482 = vmul.f32 %v2445, %v2448
        %v2484 = vperm.slane %v2247, 0
        %v2485 = vperm.slane %v2247, 1
        %v2488 = vadd.f32 %v2451, %v2484
        %v2489 = vadd.f32 %v2452, %v2485
        %v2490 = vadd.f32 %v2453, %v2484
        %v2491 = vadd.f32 %v2454, %v2485
        %v2492 = vadd.f32 %v2455, %v2484
        %v2493 = vadd.f32 %v2456, %v2485
        %v2494 = vadd.f32 %v2457, %v2484
        %v2495 = vadd.f32 %v2458, %v2485
        %v2496 = vadd.f32 %v2459, %v2484
        %v2497 = vadd.f32 %v2460, %v2485
        %v2498 = vadd.f32 %v2461, %v2484
        %v2499 = vadd.f32 %v2462, %v2485
        %v2500 = vadd.f32 %v2463, %v2484
        %v2501 = vadd.f32 %v2464, %v2485
        %v2502 = vadd.f32 %v2465, %v2484
        %v2503 = vadd.f32 %v2466, %v2485
        %v2504 = vadd.f32 %v2467, %v2484
        %v2505 = vadd.f32 %v2468, %v2485
        %v2506 = vadd.f32 %v2469, %v2484
        %v2507 = vadd.f32 %v2470, %v2485
        %v2508 = vadd.f32 %v2471, %v2484
        %v2509 = vadd.f32 %v2472, %v2485
        %v2510 = vadd.f32 %v2473, %v2484
        %v2511 = vadd.f32 %v2474, %v2485
        %v2512 = vadd.f32 %v2475, %v2484
        %v2513 = vadd.f32 %v2476, %v2485
        %v2514 = vadd.f32 %v2477, %v2484
        %v2515 = vadd.f32 %v2478, %v2485
        %v2516 = vadd.f32 %v2479, %v2484
        %v2517 = vadd.f32 %v2480, %v2485
        %v2518 = vadd.f32 %v2481, %v2484
        %v2519 = vadd.f32 %v2482, %v2485
        %v2520 = vmax.f32 %v2488, 0.0
        %v2521 = vmax.f32 %v2489, 0.0
        %v2522 = vmax.f32 %v2490, 0.0
        %v2523 = vmax.f32 %v2491, 0.0
        %v2524 = vmax.f32 %v2492, 0.0
        %v2525 = vmax.f32 %v2493, 0.0
        %v2526 = vmax.f32 %v2494, 0.0
        %v2527 = vmax.f32 %v2495, 0.0
        %v2528 = vmax.f32 %v2496, 0.0
        %v2529 = vmax.f32 %v2497, 0.0
        %v2530 = vmax.f32 %v2498, 0.0
        %v2531 = vmax.f32 %v2499, 0.0
        %v2532 = vmax.f32 %v2500, 0.0
        %v2533 = vmax.f32 %v2501, 0.0
        %v2534 = vmax.f32 %v2502, 0.0
        %v2535 = vmax.f32 %v2503, 0.0
        %v2536 = vmax.f32 %v2504, 0.0
        %v2537 = vmax.f32 %v2505, 0.0
        %v2538 = vmax.f32 %v2506, 0.0
        %v2539 = vmax.f32 %v2507, 0.0
        %v2540 = vmax.f32 %v2508, 0.0
        %v2541 = vmax.f32 %v2509, 0.0
        %v2542 = vmax.f32 %v2510, 0.0
        %v2543 = vmax.f32 %v2511, 0.0
        %v2544 = vmax.f32 %v2512, 0.0
        %v2545 = vmax.f32 %v2513, 0.0
        %v2546 = vmax.f32 %v2514, 0.0
        %v2547 = vmax.f32 %v2515, 0.0
        %v2548 = vmax.f32 %v2516, 0.0
        %v2549 = vmax.f32 %v2517, 0.0
        %v2550 = vmax.f32 %v2518, 0.0
        %v2551 = vmax.f32 %v2519, 0.0
        %v2552 = vmax.f32 %v2520, %v2524
        %v2553 = vmax.f32 %v2522, %v2526
        %v2554 = vmax.f32 %v2552, %v2528
        %v2555 = vmax.f32 %v2553, %v2530
        %v2556 = vmax.f32 %v2554, %v2532
        %v2557 = vmax.f32 %v2555, %v2534
        %v2558 = vmax.f32 %v2556, %v2536
        %v2559 = vmax.f32 %v2557, %v2538
        %v2560 = vmax.f32 %v2558, %v2540
        %v2561 = vmax.f32 %v2559, %v2542
        %v2562 = vmax.f32 %v2560, %v2544
        %v2563 = vmax.f32 %v2561, %v2546
        %v2564 = vmax.f32 %v2562, %v2548
        %v2565 = vmax.f32 %v2563, %v2550
        %v2566 = vmax.f32 %v2564, %v2565
        %v2567 = vrot.slane %v2566, 4
        %v2568 = vmax.f32 %v2566, %v2567
        %v2569 = vrot.slane %v2568, 2
        %v2570 = vmax.f32 %v2568, %v2569
        %v2571 = vrot.slane %v2570, 1
        %v2572 = vmax.f32 %v2570, %v2571
        %v2573 = vmax.f32 %v2521, %v2525
        %v2574 = vmax.f32 %v2523, %v2527
        %v2575 = vmax.f32 %v2573, %v2529
        %v2576 = vmax.f32 %v2574, %v2531
        %v2577 = vmax.f32 %v2575, %v2533
        %v2578 = vmax.f32 %v2576, %v2535
        %v2579 = vmax.f32 %v2577, %v2537
        %v2580 = vmax.f32 %v2578, %v2539
        %v2581 = vmax.f32 %v2579, %v2541
        %v2582 = vmax.f32 %v2580, %v2543
        %v2583 = vmax.f32 %v2581, %v2545
        %v2584 = vmax.f32 %v2582, %v2547
        %v2585 = vmax.f32 %v2583, %v2549
        %v2586 = vmax.f32 %v2584, %v2551
        %v2587 = vmax.f32 %v2585, %v2586
        %v2588 = vrot.slane %v2587, 4
        %v2589 = vmax.f32 %v2587, %v2588
        %v2590 = vrot.slane %v2589, 2
        %v2591 = vmax.f32 %v2589, %v2590
        %v2592 = vrot.slane %v2591, 1
        %v2593 = vmax.f32 %v2591, %v2592
        %v2596 = vrot.slane %v2593, 7
        %vm2597 = vcmask 1040384
        %v2598 = vsel %vm2597, %v2572, %v2596
        %v2600 = vlaneseq
        %vm2601 = vcmp.ge.s32.totalorder %v2600, 0
        %vm2602 = vcmp.lt.s32.totalorder %v2600, 256
        %vm2603 = vmand %vm2601, %vm2602
        %2604 = vst.msk [vmem:[%s606] sm:$0x3] %vm2603, %v2598
        %s2605 = sand.u32 %s404, 1
        %s2606 = scalar_lea.sflag [#allocation4], %s2605
        %s2607 = sand.u32 %s404, 1
        %s2608 = smul.addr %s2607, 2
        %s2609 = scalar_lea.vmem [#allocation10], %s2608
        // Predicated region
        $region105: #{tpu_custom_call.1} parent=87 // pred_check
          %p2610 = pneg %p414
        $region106: #{tpu_custom_call.1} parent=87 // pred_check_branch
          %2612 = sbr.rel (%p2610) target = $region108
        $region107: #{tpu_custom_call.1} parent=87 // pred_region
          %2614 = vsyncadd %s2606, 0
          %s2615 = smul.addr %s34, 2
          %s2616 = scalar_lea.hbm %s17, %s2615
          %s2618 = sshll.u32 %s2609, 4
          %s2619 = int_to_ptr.vmem [resolvable:$true] %s2618
          %s2620 = sshll.u32 %s2616, 4
          %s2621 = int_to_ptr.hbm [resolvable:$true] %s2620
          %2623 = dma.vmem_to_hbm [thread:$0]  %s2619, 32, %s2621, %s2606
        $region108: #{tpu_custom_call.1} parent=87 // pred_fallthru
          _
      $region88: #{tpu_custom_call.1} parent=5 // pred_fallthru
        _
      %p2624 = scmp.le.s32.totalorder 2, %s29
      // Predicated region
      $region109: #{tpu_custom_call.1} parent=5 // pred_check
        %p2625 = pneg %p2624
      $region110: #{tpu_custom_call.1} parent=5 // pred_check_branch
        %2627 = sbr.rel (%p2625) target = $region112
      $region111: #{tpu_custom_call.1} parent=5 // pred_region
        %s2628 = ssub.s32 %s29, 2
        // Predicated region
        $region113: #{tpu_custom_call.1} parent=111 // pred_check
          %p2629 = pneg %p420
        $region114: #{tpu_custom_call.1} parent=111 // pred_check_branch
          %2631 = sbr.rel (%p2629) target = $region116
        $region115: #{tpu_custom_call.1} parent=111 // pred_region
          %s2632 = sand.u32 %s405, 1
          %s2633 = scalar_lea.sflag [#allocation4], %s2632
          %s2634 = sand.u32 %s405, 1
          %s2635 = smul.addr %s2634, 2
          %s2636 = scalar_lea.vmem [#allocation10], %s2635
          %2638 = dma.done %s2633, 32
        $region116: #{tpu_custom_call.1} parent=111 // pred_fallthru
          _
      $region112: #{tpu_custom_call.1} parent=5 // pred_fallthru
        _
    $region6: #{tpu_custom_call.1} parent=1 // loop_footer
      %s33 = sadd.s32 1, %s29
    $region7: #{tpu_custom_call.1} parent=1 // loop_footer_branch
      %28 = sbr.rel target = $region3
    $region8: #{tpu_custom_call.1} parent=1 // loop_exit
      _
    %2639 = vsyncpa [#allocation3], 1
    %s2640 = scalar_lea.sflag [#allocation3], 1
    %2641 = vsyncpa %s2640, 1
    %2642 = vsyncpa [#allocation6], 1
    %2643 = vsyncpa [#allocation9], 1
    %2644 = vsyncpa [#allocation4], 1
    %s2645 = scalar_lea.sflag [#allocation4], 1
    %2646 = vsyncpa %s2645, 1

</llo_original>
